<compile_context>
chip_gen: v7x
topology: tpu7x:2x2x1
jax: 0.10.0
libtpu: 0.0.40
codegen_flags: <defaults>
</compile_context>

<pallas_src>
import functools
import math

import jax
import jax.numpy as jnp
from jax.experimental import pallas as pl
from jax.experimental.pallas import tpu as pltpu

BN_EPS = 1e-5


def _detect_vmem_limit():
    # Generation-aware scoped-VMEM budget: ~75% of physical, capped at 96 MiB
    # (v5e/v6e have 128 MiB, v7x has 64 MiB per TensorCore).
    try:
        info = pltpu.get_tpu_info()
        cap = getattr(info, "vmem_capacity_bytes", None)
        if not cap:
            return 32 * 1024 * 1024
        return int(max(32 * 1024 * 1024, min(cap * 3 // 4, 96 * 1024 * 1024)))
    except Exception:
        return 32 * 1024 * 1024


VMEM_LIMIT = _detect_vmem_limit()
BN_BLOCK_BUDGET = max(1 << 20, VMEM_LIMIT // 24)    # bf16 bytes per BN input block
CONV_ACC_BUDGET = max(2 << 20, VMEM_LIMIT // 16)    # f32 bytes for conv3x3 accumulator


# ----------------------------------------------------------------------------
# tile-size helpers (all shapes here divide the array dims -> no padding)
# ----------------------------------------------------------------------------
def _largest_divisor(n, cap, multiple=1):
    cap = max(1, min(cap, n))
    for d in range(cap, 0, -1):
        if n % d == 0 and d % multiple == 0:
            return d
    return None


def _matmul_tiles(M, K, N):
    if M <= 512:
        TM = M
    else:
        TM = (_largest_divisor(M, 512, 16) or _largest_divisor(M, 512, 8) or M)
    TK = K if K <= 512 else (_largest_divisor(K, 512, 128) or K)
    TN = N if N <= 256 else (_largest_divisor(N, 256, 128) or N)
    return TM, TK, TN


def _bn_rows(R, Wf, C, budget=BN_BLOCK_BUDGET):
    per_row = max(1, Wf * C * 2)
    cap = max(1, budget // per_row)
    return _largest_divisor(R, cap, 1) or 1


def _conv_rows(Ho, Wp, Cout, budget=CONV_ACC_BUDGET):
    if Ho * Wp * Cout * 4 <= budget:
        return Ho
    for align in (16, 8):            # prefer bf16-friendly (mult of 16) row counts
        for d in range(Ho - 1, 0, -1):
            if Ho % d:
                continue
            if d * Wp * Cout * 4 > budget:
                continue
            if (d * Wp) % align == 0:
                return d
    return Ho


# ----------------------------------------------------------------------------
# Tiled bf16 matmul (optionally + bias) with fused per-channel sum/sumsq stats.
# Used by 1x1 convs, conv1's im2col, and the conv2 head; every conv feeds a BN
# so the stats outputs are always consumed.
# ----------------------------------------------------------------------------
def _matmul_kernel(a_ref, b_ref, o_ref, s_ref, q_ref, acc_ref):
    @pl.when(pl.program_id(2) == 0)
    def _():
        acc_ref[...] = jnp.zeros_like(acc_ref)

    acc_ref[...] += jnp.dot(a_ref[...], b_ref[...],
                            preferred_element_type=jnp.float32)

    @pl.when(pl.program_id(2) == pl.num_programs(2) - 1)
    def _():
        y = acc_ref[...]
        o_ref[...] = y.astype(o_ref.dtype)
        s_ref[0] = jnp.sum(y, axis=0, keepdims=True)
        q_ref[0] = jnp.sum(y * y, axis=0, keepdims=True)


def _matmul_bias_kernel(a_ref, b_ref, bias_ref, o_ref, s_ref, q_ref, acc_ref):
    @pl.when(pl.program_id(2) == 0)
    def _():
        acc_ref[...] = jnp.zeros_like(acc_ref)

    acc_ref[...] += jnp.dot(a_ref[...], b_ref[...],
                            preferred_element_type=jnp.float32)

    @pl.when(pl.program_id(2) == pl.num_programs(2) - 1)
    def _():
        y = acc_ref[...] + bias_ref[...]
        o_ref[...] = y.astype(o_ref.dtype)
        s_ref[0] = jnp.sum(y, axis=0, keepdims=True)
        q_ref[0] = jnp.sum(y * y, axis=0, keepdims=True)


def matmul(a, w, bias=None):
    M, K = a.shape
    K2, N = w.shape
    assert K == K2
    TM, TK, TN = _matmul_tiles(M, K, N)
    nm, nn, nk = M // TM, N // TN, K // TK
    grid = (nm, nn, nk)
    a_spec = pl.BlockSpec((TM, TK), lambda i, j, k: (i, k))
    w_spec = pl.BlockSpec((TK, TN), lambda i, j, k: (k, j))
    o_spec = pl.BlockSpec((TM, TN), lambda i, j, k: (i, j))
    st_spec = pl.BlockSpec((1, 1, TN), lambda i, j, k: (i, 0, j))
    out_shape = (jax.ShapeDtypeStruct((M, N), jnp.bfloat16),
                 jax.ShapeDtypeStruct((nm, 1, N), jnp.float32),
                 jax.ShapeDtypeStruct((nm, 1, N), jnp.float32))
    if bias is None:
        kernel, in_specs, args = _matmul_kernel, [a_spec, w_spec], (a, w)
    else:
        kernel = _matmul_bias_kernel
        in_specs = [a_spec, w_spec,
                    pl.BlockSpec((1, TN), lambda i, j, k: (0, j))]
        args = (a, w, bias)
    out, ps, pq = pl.pallas_call(
        kernel,
        out_shape=out_shape,
        grid_spec=pltpu.PrefetchScalarGridSpec(
            num_scalar_prefetch=0,
            grid=grid,
            in_specs=in_specs,
            out_specs=(o_spec, st_spec, st_spec),
            scratch_shapes=[pltpu.VMEM((TM, TN), jnp.float32)]),
        compiler_params=pltpu.CompilerParams(
            dimension_semantics=("parallel", "parallel", "arbitrary"),
            vmem_limit_bytes=VMEM_LIMIT),
    )(*args)
    return out, (ps, pq)


# ----------------------------------------------------------------------------
# Fused 3x3 convolutions (no im2col). The (padded / phase-decomposed) NHWC
# image stays flat in VMEM; each of the 9 taps is a contiguous slab matmul
# accumulated in a f32 scratch.  Output is "wide": (B, Ho, Wp, Cout) whose
# first Wo columns per row are valid; per-channel BN stats (junk columns
# masked) are emitted alongside the activation.
# ----------------------------------------------------------------------------
def _wide_stats(acc, Wp, Wo):
    if Wp == Wo:
        s = jnp.sum(acc, axis=0, keepdims=True)
        q = jnp.sum(acc * acc, axis=0, keepdims=True)
        return s, q
    m = acc.shape[0]
    col = jax.lax.broadcasted_iota(jnp.int32, acc.shape, 0) % Wp
    xm = jnp.where(col < Wo, acc, 0.0)
    s = jnp.sum(xm, axis=0, keepdims=True)
    q = jnp.sum(xm * acc, axis=0, keepdims=True)
    return s, q


def _conv3x3_s1_kernel(x_ref, w_ref, o_ref, s_ref, q_ref, acc_ref, *, Wp, TR, Wo):
    m = TR * Wp
    base = pl.program_id(1) * m
    for t in range(9):
        ki, kj = t // 3, t % 3
        lhs = x_ref[0, pl.ds(base + ki * Wp + kj, m), :]
        part = jnp.dot(lhs, w_ref[t], preferred_element_type=jnp.float32)
        if t == 0:
            acc_ref[...] = part
        else:
            acc_ref[...] += part
    acc = acc_ref[...]
    s, q = _wide_stats(acc, Wp, Wo)
    s_ref[0] = s
    q_ref[0] = q
    o_ref[0] = acc.astype(o_ref.dtype)


def conv3x3_s1(x, w_taps):
    B, H, W, Cin = x.shape
    Cout = w_taps.shape[-1]
    Ho, Wo, Wp = H, W, W + 2
    # 1 pad row/col each side + one extra bottom row so the last tap's flat
    # slab stays in-bounds (the extra elements only feed junk columns).
    xp = jnp.pad(x, ((0, 0), (1, 2), (1, 1), (0, 0)))
    xf = xp.reshape(B, (H + 3) * Wp, Cin)
    TR = _conv_rows(Ho, Wp, Cout)
    m = TR * Wp
    nrt = Ho // TR
    out, ps, pq = pl.pallas_call(
        functools.partial(_conv3x3_s1_kernel, Wp=Wp, TR=TR, Wo=Wo),
        out_shape=(jax.ShapeDtypeStruct((B, Ho * Wp, Cout), jnp.bfloat16),
                   jax.ShapeDtypeStruct((B * nrt, 1, Cout), jnp.float32),
                   jax.ShapeDtypeStruct((B * nrt, 1, Cout), jnp.float32)),
        grid_spec=pltpu.PrefetchScalarGridSpec(
            num_scalar_prefetch=0,
            grid=(B, nrt),
            in_specs=[
                pl.BlockSpec((1, (H + 3) * Wp, Cin), lambda b, i: (b, 0, 0)),
                pl.BlockSpec((9, Cin, Cout), lambda b, i: (0, 0, 0)),
            ],
            out_specs=(pl.BlockSpec((1, m, Cout), lambda b, i: (b, i, 0)),
                       pl.BlockSpec((1, 1, Cout),
                                    lambda b, i: (b * nrt + i, 0, 0)),
                       pl.BlockSpec((1, 1, Cout),
                                    lambda b, i: (b * nrt + i, 0, 0))),
            scratch_shapes=[pltpu.VMEM((m, Cout), jnp.float32)]),
        compiler_params=pltpu.CompilerParams(
            dimension_semantics=("parallel", "parallel"),
            vmem_limit_bytes=VMEM_LIMIT),
    )(xf, w_taps)
    return out.reshape(B, Ho, Wp, Cout), Wo, (ps, pq)


def _conv3x3_s2_kernel(p00, p01, p10, p11, w_ref, o_ref, s_ref, q_ref, acc_ref,
                       *, phW, TR, Wo):
    m = TR * phW
    r0 = pl.program_id(1) * TR
    phases = (p00, p01, p10, p11)
    for t in range(9):
        ki, kj = t // 3, t % 3
        ref = phases[(ki % 2) * 2 + (kj % 2)]
        lhs = ref[0, pl.ds((r0 + ki // 2) * phW + kj // 2, m), :]
        part = jnp.dot(lhs, w_ref[t], preferred_element_type=jnp.float32)
        if t == 0:
            acc_ref[...] = part
        else:
            acc_ref[...] += part
    acc = acc_ref[...]
    s, q = _wide_stats(acc, phW, Wo)
    s_ref[0] = s
    q_ref[0] = q
    o_ref[0] = acc.astype(o_ref.dtype)


def conv3x3_s2(x, w_taps):
    # 3x3 / stride 2 / pad 1 via 4 stride-phase planes (one ~1x copy instead of
    # a 9x im2col patch tensor); each tap reads a contiguous slab of a phase.
    B, H, W, Cin = x.shape
    Cout = w_taps.shape[-1]
    Ho, Wo = H // 2, W // 2
    phH, phW = Ho + 2, Wo + 1
    xp = jnp.pad(x, ((0, 0), (1, 2 * phH - H - 1), (1, 2 * phW - W - 1), (0, 0)))
    phases = [xp[:, ri::2, rj::2, :].reshape(B, phH * phW, Cin)
              for ri in range(2) for rj in range(2)]
    TR = _conv_rows(Ho, phW, Cout)
    m = TR * phW
    nrt = Ho // TR
    ph_spec = pl.BlockSpec((1, phH * phW, Cin), lambda b, i: (b, 0, 0))
    out, ps, pq = pl.pallas_call(
        functools.partial(_conv3x3_s2_kernel, phW=phW, TR=TR, Wo=Wo),
        out_shape=(jax.ShapeDtypeStruct((B, Ho * phW, Cout), jnp.bfloat16),
                   jax.ShapeDtypeStruct((B * nrt, 1, Cout), jnp.float32),
                   jax.ShapeDtypeStruct((B * nrt, 1, Cout), jnp.float32)),
        grid_spec=pltpu.PrefetchScalarGridSpec(
            num_scalar_prefetch=0,
            grid=(B, nrt),
            in_specs=[ph_spec, ph_spec, ph_spec, ph_spec,
                      pl.BlockSpec((9, Cin, Cout), lambda b, i: (0, 0, 0))],
            out_specs=(pl.BlockSpec((1, m, Cout), lambda b, i: (b, i, 0)),
                       pl.BlockSpec((1, 1, Cout),
                                    lambda b, i: (b * nrt + i, 0, 0)),
                       pl.BlockSpec((1, 1, Cout),
                                    lambda b, i: (b * nrt + i, 0, 0))),
            scratch_shapes=[pltpu.VMEM((m, Cout), jnp.float32)]),
        compiler_params=pltpu.CompilerParams(
            dimension_semantics=("parallel", "parallel"),
            vmem_limit_bytes=VMEM_LIMIT),
    )(*phases, w_taps)
    return out.reshape(B, Ho, phW, Cout), Wo, (ps, pq)


# ----------------------------------------------------------------------------
# 1x1 conv = tiled matmul; conv1 (7x7 s2, Cin=3) keeps im2col (K=147 matmul).
# ----------------------------------------------------------------------------
def conv1x1(x, w, bias=None, stride=1):
    if stride != 1:
        x = x[:, ::stride, ::stride, :]
    B, H, W, C = x.shape
    out, stats = matmul(x.reshape(B * H * W, C), w, bias)
    return out.reshape(B, H, W, -1), stats


def conv7x7_s2(x, w_taps, pad=3):
    B, H, W, Cin = x.shape
    kh = kw = 7
    stride = 2
    Cout = w_taps.shape[-1]
    Ho = (H + 2 * pad - kh) // stride + 1
    Wo = (W + 2 * pad - kw) // stride + 1
    xp = jnp.pad(x, ((0, 0), (pad, pad), (pad, pad), (0, 0)))
    cols = []
    for ki in range(kh):
        for kj in range(kw):
            cols.append(xp[:, ki:ki + stride * (Ho - 1) + 1:stride,
                              kj:kj + stride * (Wo - 1) + 1:stride, :])
    patches = jnp.stack(cols, axis=3).reshape(B * Ho * Wo, kh * kw * Cin)
    out, stats = matmul(patches, w_taps.reshape(kh * kw * Cin, Cout), None)
    return out.reshape(B, Ho, Wo, Cout), stats


# ----------------------------------------------------------------------------
# BatchNorm (training-mode batch stats).  Stats come pre-reduced per conv tile
# (fused into the conv kernels); the single remaining pass reduces the tiny
# (T,1,C) partials and does normalize + optional residual add + optional ReLU.
# `valid_w` drops the junk columns of "wide" conv outputs.
# ----------------------------------------------------------------------------
def _bn_scale_shift(s_ref, q_ref, g_ref, b_ref, inv_count):
    s = jnp.sum(s_ref[...], axis=0)           # (1, C)
    q = jnp.sum(q_ref[...], axis=0)
    mean = s * inv_count
    var = jnp.maximum(q * inv_count - mean * mean, 0.0)   # clamp cancellation
    scale = g_ref[...] * jax.lax.rsqrt(var + BN_EPS)
    shift = b_ref[...] - mean * scale
    return scale, shift


def _bn_norm_kernel(x_ref, s_ref, q_ref, g_ref, b_ref, o_ref, *,
                    wv, inv_count, relu):
    scale, shift = _bn_scale_shift(s_ref, q_ref, g_ref, b_ref, inv_count)
    y = x_ref[:, :wv, :].astype(jnp.float32) * scale + shift
    if relu:
        y = jnp.maximum(y, 0.0)
    o_ref[...] = y.astype(o_ref.dtype)


def _bn_norm_add_kernel(x_ref, r_ref, s_ref, q_ref, g_ref, b_ref, o_ref, *,
                        wv, inv_count):
    scale, shift = _bn_scale_shift(s_ref, q_ref, g_ref, b_ref, inv_count)
    y = x_ref[:, :wv, :].astype(jnp.float32) * scale + shift
    y = y + r_ref[...].astype(jnp.float32)
    o_ref[...] = jnp.maximum(y, 0.0).astype(o_ref.dtype)


def batchnorm(x, gamma, beta, stats, relu=False, valid_w=None, residual=None):
    B, H, Wf, C = x.shape
    Wv = Wf if valid_w is None else valid_w
    R = B * H
    xr = x.reshape(R, Wf, C)
    TR = _bn_rows(R, Wf, C)
    ps, pq = stats
    T = ps.shape[0]
    inv_count = 1.0 / float(R * Wv)

    stat_spec = pl.BlockSpec((T, 1, C), lambda i: (0, 0, 0))
    vec_spec = pl.BlockSpec((1, C), lambda i: (0, 0))
    if residual is None:
        kernel = functools.partial(_bn_norm_kernel, wv=Wv,
                                   inv_count=inv_count, relu=relu)
        in_specs = [pl.BlockSpec((TR, Wf, C), lambda i: (i, 0, 0)),
                    stat_spec, stat_spec, vec_spec, vec_spec]
        args = (xr, ps, pq, gamma, beta)
    else:
        rr = residual.reshape(R, Wv, C)
        kernel = functools.partial(_bn_norm_add_kernel, wv=Wv,
                                   inv_count=inv_count)
        in_specs = [pl.BlockSpec((TR, Wf, C), lambda i: (i, 0, 0)),
                    pl.BlockSpec((TR, Wv, C), lambda i: (i, 0, 0)),
                    stat_spec, stat_spec, vec_spec, vec_spec]
        args = (xr, rr, ps, pq, gamma, beta)

    out = pl.pallas_call(
        kernel,
        out_shape=jax.ShapeDtypeStruct((R, Wv, C), jnp.bfloat16),
        grid_spec=pltpu.PrefetchScalarGridSpec(
            num_scalar_prefetch=0,
            grid=(R // TR,),
            in_specs=in_specs,
            out_specs=pl.BlockSpec((TR, Wv, C), lambda i: (i, 0, 0))),
        compiler_params=pltpu.CompilerParams(
            dimension_semantics=("parallel",),
            vmem_limit_bytes=VMEM_LIMIT),
    )(*args)
    return out.reshape(B, H, Wv, C)


# ----------------------------------------------------------------------------
# MaxPool 3x3 / stride 2 / pad 1: local 9-tap max accumulation, single store.
# Global average pool.
# ----------------------------------------------------------------------------
def _maxpool_kernel(x0, x1, x2, x3, o_ref, *, Ho, Wo):
    phases = (x0, x1, x2, x3)
    acc = None
    for t in range(9):
        ki, kj = t // 3, t % 3
        ref = phases[(ki % 2) * 2 + (kj % 2)]
        v = ref[0, ki // 2:ki // 2 + Ho, kj // 2:kj // 2 + Wo, :]
        acc = v if acc is None else jnp.maximum(acc, v)
    o_ref[0] = acc


def maxpool_3x3_s2(x):
    B, H, W, C = x.shape
    k, s, pad = 3, 2, 1
    Ho = (H + 2 * pad - k) // s + 1
    Wo = (W + 2 * pad - k) // s + 1
    phH, phW = Ho + 1, Wo + 1
    Hp, Wp = s * phH, s * phW
    xp = jnp.pad(x, ((0, 0), (pad, Hp - H - pad), (pad, Wp - W - pad), (0, 0)),
                 constant_values=-jnp.inf)
    phases = [xp[:, ri::s, rj::s, :] for ri in range(s) for rj in range(s)]
    return pl.pallas_call(
        functools.partial(_maxpool_kernel, Ho=Ho, Wo=Wo),
        out_shape=jax.ShapeDtypeStruct((B, Ho, Wo, C), jnp.bfloat16),
        grid_spec=pltpu.PrefetchScalarGridSpec(
            num_scalar_prefetch=0,
            grid=(B,),
            in_specs=[pl.BlockSpec((1, phH, phW, C),
                                   lambda b: (b, 0, 0, 0))] * 4,
            out_specs=pl.BlockSpec((1, Ho, Wo, C), lambda b: (b, 0, 0, 0))),
        compiler_params=pltpu.CompilerParams(
            dimension_semantics=("parallel",),
            vmem_limit_bytes=VMEM_LIMIT),
    )(*phases)


def _avgpool_kernel(x_ref, o_ref):
    o_ref[0] = jnp.mean(x_ref[0].astype(jnp.float32), axis=0, keepdims=True)


def global_avgpool(x):
    B, H, W, C = x.shape
    xr = x.reshape(B, H * W, C)
    out = pl.pallas_call(
        _avgpool_kernel,
        out_shape=jax.ShapeDtypeStruct((B, 1, C), jnp.float32),
        grid_spec=pltpu.PrefetchScalarGridSpec(
            num_scalar_prefetch=0,
            grid=(B,),
            in_specs=[pl.BlockSpec((1, H * W, C), lambda b: (b, 0, 0))],
            out_specs=pl.BlockSpec((1, 1, C), lambda b: (b, 0, 0))),
        compiler_params=pltpu.CompilerParams(
            dimension_semantics=("parallel",),
            vmem_limit_bytes=VMEM_LIMIT),
    )(xr)
    return out.reshape(B, C)


# ----------------------------------------------------------------------------
# ResNet-50 (torchvision Bottleneck, v1.5 — stride on the 3x3 conv) + the
# extra conv2/bn2/relu head and global average pool from the PyTorch module.
# Weights are stored pre-transposed / bf16 once at init.
# ----------------------------------------------------------------------------
BLOCKS = [3, 4, 6, 3]
WIDTHS = [64, 128, 256, 512]
EXP = 4


class KeyGen:
    def __init__(self, key):
        self.key, self.i = key, 0

    def __call__(self):
        self.i += 1
        return jax.random.fold_in(self.key, self.i)


def _conv_taps(key, cout, cin, kh, kw):
    fan_in = cin * kh * kw
    w = jax.random.normal(key, (cout, cin, kh, kw), jnp.float32) / math.sqrt(fan_in)
    # (Cout,Cin,kh,kw) -> (kh*kw, Cin, Cout): hoisted out of the forward pass.
    return jnp.transpose(w, (2, 3, 1, 0)).reshape(kh * kw, cin, cout).astype(jnp.bfloat16)


def _conv_1x1w(key, cin, cout):
    w = jax.random.normal(key, (cin, cout), jnp.float32) / math.sqrt(cin)
    return w.astype(jnp.bfloat16)


def _bn_params(c):
    return jnp.ones((1, c), jnp.float32), jnp.zeros((1, c), jnp.float32)


def init_params(key):
    kg = KeyGen(key)
    params = {'conv1_w': _conv_taps(kg(), 64, 3, 7, 7)}
    params['bn1_g'], params['bn1_b'] = _bn_params(64)
    in_ch = 64
    layers = []
    for n, w in zip(BLOCKS, WIDTHS):
        blocks = []
        for bi in range(n):
            p = {'w1': _conv_1x1w(kg(), in_ch, w),
                 'w2': _conv_taps(kg(), w, w, 3, 3),
                 'w3': _conv_1x1w(kg(), w, w * EXP)}
            p['g1'], p['b1'] = _bn_params(w)
            p['g2'], p['b2'] = _bn_params(w)
            p['g3'], p['b3'] = _bn_params(w * EXP)
            if bi == 0:
                p['wd'] = _conv_1x1w(kg(), in_ch, w * EXP)
                p['gd'], p['bd'] = _bn_params(w * EXP)
            blocks.append(p)
            in_ch = w * EXP
        layers.append(blocks)
    params['layers'] = layers
    params['conv2_w'] = _conv_1x1w(kg(), 2048, 1024)
    bnd = 1.0 / math.sqrt(2048.0)
    params['conv2_b'] = jax.random.uniform(kg(), (1, 1024), jnp.float32, -bnd, bnd)
    params['bn2_g'], params['bn2_b'] = _bn_params(1024)
    return params


def bottleneck(x, p, stride, downsample):
    out, st = conv1x1(x, p['w1'])
    out = batchnorm(out, p['g1'], p['b1'], st, relu=True)
    if stride == 1:
        wide, wo, st = conv3x3_s1(out, p['w2'])
    else:
        wide, wo, st = conv3x3_s2(out, p['w2'])
    out = batchnorm(wide, p['g2'], p['b2'], st, relu=True, valid_w=wo)
    out, st = conv1x1(out, p['w3'])
    if downsample:
        idn, std = conv1x1(x, p['wd'], stride=stride)
        idn = batchnorm(idn, p['gd'], p['bd'], std, relu=False)
    else:
        idn = x
    return batchnorm(out, p['g3'], p['b3'], st, residual=idn)   # add + ReLU fused


def res50_forward(params, img_nchw):
    B = img_nchw.shape[0]
    x = jnp.transpose(img_nchw, (0, 2, 3, 1)).astype(jnp.bfloat16)  # NCHW->NHWC
    x, st = conv7x7_s2(x, params['conv1_w'])
    x = batchnorm(x, params['bn1_g'], params['bn1_b'], st, relu=True)
    x = maxpool_3x3_s2(x)
    for li, blocks in enumerate(params['layers']):
        for bi, p in enumerate(blocks):
            stride = 2 if (bi == 0 and li > 0) else 1
            x = bottleneck(x, p, stride, downsample=(bi == 0))
    x, st = conv1x1(x, params['conv2_w'], params['conv2_b'])   # 1x1, 2048->1024
    x = batchnorm(x, params['bn2_g'], params['bn2_b'], st, relu=True)
    x = global_avgpool(x)                                      # (B, 1024) f32
    return x.reshape(B, 1024, 1)                               # == out.view(B, 1024, -1)


if __name__ == "__main__":
    key = jax.random.PRNGKey(0)
    params = init_params(key)
    # small but stride-compatible input: 64x64 spatial -> 2x2 before global pool
    img = jax.random.normal(jax.random.fold_in(key, 12345), (2, 3, 64, 64),
                            jnp.float32)
    out = res50_forward(params, img)
    out = jax.block_until_ready(out)
    assert out.shape == (2, 1024, 1), out.shape
    assert bool(jnp.all(jnp.isfinite(out)))
    print("KERNEL_OK")
</pallas_src>

<mosaic_0001>
module attributes {stable_mosaic.version = 11 : i64} {
  func.func @_matmul_kernel(%arg0: i32, %arg1: i32, %arg2: i32, %arg3: memref<512x147xbf16, #tpu.memory_space<vmem>>, %arg4: memref<147x64xbf16, #tpu.memory_space<vmem>>, %arg5: memref<512x64xbf16, #tpu.memory_space<vmem>>, %arg6: memref<1x1x64xf32, #tpu.memory_space<vmem>>, %arg7: memref<1x1x64xf32, #tpu.memory_space<vmem>>, %arg8: memref<512x64xf32, #tpu.memory_space<vmem>>) attributes {dimension_semantics = [#tpu.dimension_semantics<parallel>, #tpu.dimension_semantics<parallel>, #tpu.dimension_semantics<arbitrary>], iteration_bounds = array<i64: 4, 1, 1>, scalar_prefetch = 0 : i64, scratch_operands = 1 : i64, tpu.core_type = #tpu.core_type<tc>, window_params = [{transform_indices = @transform_0, window_bounds = array<i64: 512, 147>}, {transform_indices = @transform_1, window_bounds = array<i64: 147, 64>}, {transform_indices = @transform_2, window_bounds = array<i64: 512, 64>}, {transform_indices = @transform_3, window_bounds = array<i64: 1, 1, 64>}, {transform_indices = @transform_4, window_bounds = array<i64: 1, 1, 64>}]} {
    %c0_i32 = arith.constant 0 : i32
    %0 = arith.cmpi eq, %arg2, %c0_i32 : i32
    %1 = arith.extui %0 : i1 to i32
    %c0_i32_0 = arith.constant 0 : i32
    %2 = arith.cmpi ne, %1, %c0_i32_0 : i32
    scf.if %2 {
      %cst_10 = arith.constant 0.000000e+00 : f32
      %12 = vector.broadcast %cst_10 : f32 to vector<512x64xf32>
      %c0_11 = arith.constant 0 : index
      %c0_12 = arith.constant 0 : index
      %13 = vector.load %arg8[%c0_11, %c0_12] : memref<512x64xf32, #tpu.memory_space<vmem>>, vector<512x64xf32>
      tpu.vector_store %arg8[%c0_11, %c0_12], %12 {strides = array<i32>} : memref<512x64xf32, #tpu.memory_space<vmem>>, vector<512x64xf32>,
    } else {
    }
    %c0 = arith.constant 0 : index
    %c0_1 = arith.constant 0 : index
    %3 = vector.load %arg8[%c0, %c0_1] : memref<512x64xf32, #tpu.memory_space<vmem>>, vector<512x64xf32>
    %c0_2 = arith.constant 0 : index
    %c0_3 = arith.constant 0 : index
    %4 = vector.load %arg3[%c0_2, %c0_3] : memref<512x147xbf16, #tpu.memory_space<vmem>>, vector<512x147xbf16>
    %c0_4 = arith.constant 0 : index
    %c0_5 = arith.constant 0 : index
    %5 = vector.load %arg4[%c0_4, %c0_5] : memref<147x64xbf16, #tpu.memory_space<vmem>>, vector<147x64xbf16>
    %cst = arith.constant dense<0.000000e+00> : vector<512x64xf32>
    %6 = tpu.matmul %4, %5, %cst {dimension_numbers = #tpu.dot_dimension_numbers<[1], [0], [0], [1], [0, 0, 1, 1], [], []>} : vector<512x147xbf16>, vector<147x64xbf16>, vector<512x64xf32> -> vector<512x64xf32>
    %7 = arith.addf %3, %6 : vector<512x64xf32>
    %c0_6 = arith.constant 0 : index
    %c0_7 = arith.constant 0 : index
    %8 = vector.load %arg8[%c0_6, %c0_7] : memref<512x64xf32, #tpu.memory_space<vmem>>, vector<512x64xf32>
    tpu.vector_store %arg8[%c0_6, %c0_7], %7 {strides = array<i32>} : memref<512x64xf32, #tpu.memory_space<vmem>>, vector<512x64xf32>,
    %c0_i32_8 = arith.constant 0 : i32
    %9 = arith.cmpi eq, %arg2, %c0_i32_8 : i32
    %10 = arith.extui %9 : i1 to i32
    %c0_i32_9 = arith.constant 0 : i32
    %11 = arith.cmpi ne, %10, %c0_i32_9 : i32
    scf.if %11 {
      %c0_10 = arith.constant 0 : index
      %c0_11 = arith.constant 0 : index
      %12 = vector.load %arg8[%c0_10, %c0_11] : memref<512x64xf32, #tpu.memory_space<vmem>>, vector<512x64xf32>
      %13 = arith.truncf %12 : vector<512x64xf32> to vector<512x64xbf16>
      %c0_12 = arith.constant 0 : index
      %c0_13 = arith.constant 0 : index
      %14 = vector.load %arg5[%c0_12, %c0_13] : memref<512x64xbf16, #tpu.memory_space<vmem>>, vector<512x64xbf16>
      tpu.vector_store %arg5[%c0_12, %c0_13], %13 {strides = array<i32>} : memref<512x64xbf16, #tpu.memory_space<vmem>>, vector<512x64xbf16>,
      %cst_14 = arith.constant dense<0.000000e+00> : vector<64xf32>
      %15 = vector.multi_reduction <add>, %12, %cst_14 [0] : vector<512x64xf32> to vector<64xf32>
      %16 = vector.shape_cast %15 : vector<64xf32> to vector<1x64xf32>
      %c0_15 = arith.constant 0 : index
      %c0_16 = arith.constant 0 : index
      %c0_17 = arith.constant 0 : index
      %17 = vector.load %arg6[%c0_15, %c0_16, %c0_17] : memref<1x1x64xf32, #tpu.memory_space<vmem>>, vector<1x1x64xf32>
      %18 = vector.shape_cast %17 : vector<1x1x64xf32> to vector<1x64xf32>
      %19 = vector.shape_cast %16 : vector<1x64xf32> to vector<1x1x64xf32>
      tpu.vector_store %arg6[%c0_15, %c0_16, %c0_17], %19 {strides = array<i32>} : memref<1x1x64xf32, #tpu.memory_space<vmem>>, vector<1x1x64xf32>,
      %20 = arith.mulf %12, %12 : vector<512x64xf32>
      %cst_18 = arith.constant dense<0.000000e+00> : vector<64xf32>
      %21 = vector.multi_reduction <add>, %20, %cst_18 [0] : vector<512x64xf32> to vector<64xf32>
      %22 = vector.shape_cast %21 : vector<64xf32> to vector<1x64xf32>
      %c0_19 = arith.constant 0 : index
      %c0_20 = arith.constant 0 : index
      %c0_21 = arith.constant 0 : index
      %23 = vector.load %arg7[%c0_19, %c0_20, %c0_21] : memref<1x1x64xf32, #tpu.memory_space<vmem>>, vector<1x1x64xf32>
      %24 = vector.shape_cast %23 : vector<1x1x64xf32> to vector<1x64xf32>
      %25 = vector.shape_cast %22 : vector<1x64xf32> to vector<1x1x64xf32>
      tpu.vector_store %arg7[%c0_19, %c0_20, %c0_21], %25 {strides = array<i32>} : memref<1x1x64xf32, #tpu.memory_space<vmem>>, vector<1x1x64xf32>,
    } else {
    }
    return
  }
  func.func @transform_0(%arg0: i32, %arg1: i32, %arg2: i32) -> (i32, i32) {
    %c0_i32 = arith.constant 0 : i32
    return %arg0, %arg2 : i32, i32
  }
  func.func @transform_1(%arg0: i32, %arg1: i32, %arg2: i32) -> (i32, i32) {
    %c0_i32 = arith.constant 0 : i32
    return %arg2, %arg1 : i32, i32
  }
  func.func @transform_2(%arg0: i32, %arg1: i32, %arg2: i32) -> (i32, i32) {
    %c0_i32 = arith.constant 0 : i32
    return %arg0, %arg1 : i32, i32
  }
  func.func @transform_3(%arg0: i32, %arg1: i32, %arg2: i32) -> (i32, i32, i32) {
    %c0_i32 = arith.constant 0 : i32
    %c0_i32_0 = arith.constant 0 : i32
    return %arg0, %c0_i32, %arg1 : i32, i32, i32
  }
  func.func @transform_4(%arg0: i32, %arg1: i32, %arg2: i32) -> (i32, i32, i32) {
    %c0_i32 = arith.constant 0 : i32
    %c0_i32_0 = arith.constant 0 : i32
    return %arg0, %c0_i32, %arg1 : i32, i32, i32
  }
}

</mosaic_0001>

<llo_original>
// kernel: tpu_custom_call.1
$region0: #{tpu_custom_call.1}
  #allocation0 [shape = 'u32[]', space=smem, size = 0x4, offset = 0x4, fixed_abs, tag = 'smem constant byte address 0x4 - core index']
  #allocation1 [shape = 'u32[144,128]{1,0:T(1,128)}', space=vmem, size = 0x12000, scoped, tag = 'internal scratch']
  #allocation2 [shape = 'f32[512,64]{1,0:T(8,128)}', space=vmem, size = 0x40000, scoped, tag = 'scratch operand']
  %s0 = inlined_call_operand.vmem [shape: bf16[2048,147], index: 0, kind: input, shape index: {}]
  %s1 = inlined_call_operand.vmem [shape: bf16[147,64], index: 1, kind: input, shape index: {}]
  %s2 = inlined_call_operand.vmem [shape: bf16[2048,64], index: 2, kind: output, shape index: {0}]
  %s3 = inlined_call_operand.hbm [shape: f32[4,1,64], index: 3, kind: output, shape index: {1}]
  %s4 = inlined_call_operand.hbm [shape: f32[4,1,64], index: 4, kind: output, shape index: {2}]
  %5 = xla_tuple %s2, %s3, %s4
  %s6 = sld [smem:[#allocation0]]
  $region65: #{tpu_custom_call.1} parent=0
    _
  %s8 = ssub.s32 1, %s6
  %s9 = scalar_select 0, %s8, %s6
  $region1: #{tpu_custom_call.1} parent=0
    #allocation3 [shape = 'u8[1024]{0}', space=vmem, size = 0x400, scoped, tag = 'output window, operand 1']
    #allocation4 [shape = 's32[2]{0}', space=sflag, size = 0x8, scoped, tag = 'scoped memory for tpu_custom_call.1']
    #allocation5 [shape = 'u8[1024]{0}', space=vmem, size = 0x400, scoped, tag = 'output window, operand 2']
    #allocation6 [shape = 's32[2]{0}', space=sflag, size = 0x8, scoped, tag = 'scoped memory for tpu_custom_call.1']
    %10 = vsyncpa [#allocation4], 0
    %s11 = scalar_lea.sflag [#allocation4], 1
    %12 = vsyncpa %s11, 0
    %13 = vsyncpa [#allocation6], 0
    %s14 = scalar_lea.sflag [#allocation6], 1
    %15 = vsyncpa %s14, 0
    loop: start=0, step=1, limit=6
    $region2: #{tpu_custom_call.1} parent=1 // loop_pre_header
      _
    $region3: #{tpu_custom_call.1} parent=1 // loop_header
      %s17 = sphi 0, %s21
      %p18 = scmp.ge.s32.totalorder %s17, 6
      %s24 = sphi 0, %s43
      %s25 = sphi 0, %s39
      %s26 = sphi 0, %s35
      %s27 = sphi 0, %s24
      %s28 = sphi 0, %s25
      %s29 = sphi 0, %s26
      %s30 = sphi 0, %s27
      %s31 = sphi 0, %s28
      %s32 = sphi 0, %s29
      %s48 = sphi 0, %s50
      %s51 = sphi 0, %s48
      %s52 = sphi 0, %s51
      %s68 = sphi 0, %s52
      %s76 = sphi 0, %s78
      %s79 = sphi 0, %s76
      %s80 = sphi 0, %s79
      %s96 = sphi 0, %s80
      %s104 = sphi 0, %s106
      %s107 = sphi 0, %s104
      %s108 = sphi 0, %s107
      %s124 = sphi 0, %s108
      %s132 = sphi 0, %s134
      %s135 = sphi 0, %s132
      %s136 = sphi 0, %s135
      %s152 = sphi 0, %s136
      %s160 = sphi 0, %s162
      %s163 = sphi 0, %s160
      %s164 = sphi 0, %s163
      %s180 = sphi 0, %s164
    $region4: #{tpu_custom_call.1} parent=1 // loop_header_branch
      %20 = sbr.rel (%p18) target = $region8
    $region5: #{tpu_custom_call.1} parent=1 // loop_body
      %s22 = ssub.s32 %s17, 1
      %s23 = ssub.s32 %s17, 2
      %s33 = sadd.s32 1, %s26
      %p34 = scmp.ge.s32.totalorder %s33, 1
      %s35 = scalar_select %p34, 0, %s33
      %s36 = sadd.s32 1, %s25
      %s37 = scalar_select %p34, %s36, %s25
      %p38 = scmp.ge.s32.totalorder %s37, 1
      %s39 = scalar_select %p38, 0, %s37
      %s40 = sadd.s32 1, %s24
      %s41 = scalar_select %p38, %s40, %s24
      %p42 = scmp.ge.s32.totalorder %s41, 4
      %s43 = scalar_select %p42, 0, %s41
      %s44 = ssub.s32 %s24, %s43
      %s45 = ssub.s32 %s26, %s35
      %s46 = sor.u32 %s44, %s45
      %p47 = scmp.eq.s32.totalorder %s46, 0
      %s49 = sadd.s32 %s48, 1
      %s50 = scalar_select %p47, %s48, %s49
      %p53 = pneg %p47
      %p54 = scmp.eq.s32.totalorder %s17, 3
      %p55 = por %p53, %p54
      %p56 = scmp.ne.s32.totalorder %s48, %s51
      %p57 = scmp.eq.s32.totalorder %s17, 0
      %p58 = por %p56, %p57
      %p59 = scmp.ne.s32.totalorder %s48, %s51
      %p60 = scmp.eq.s32.totalorder %s22, 3
      %p61 = por %p59, %p60
      %p62 = scmp.ne.s32.totalorder %s51, %s52
      %p63 = scmp.eq.s32.totalorder %s22, 0
      %p64 = por %p62, %p63
      %p65 = scmp.ne.s32.totalorder %s51, %s52
      %p66 = scmp.eq.s32.totalorder %s23, 3
      %p67 = por %p65, %p66
      %p69 = scmp.ne.s32.totalorder %s52, %s68
      %p70 = scmp.eq.s32.totalorder %s23, 0
      %p71 = por %p69, %p70
      %s72 = ssub.s32 %s26, %s35
      %s73 = ssub.s32 %s25, %s39
      %s74 = sor.u32 %s72, %s73
      %p75 = scmp.eq.s32.totalorder %s74, 0
      %s77 = sadd.s32 %s76, 1
      %s78 = scalar_select %p75, %s76, %s77
      %p81 = pneg %p75
      %p82 = scmp.eq.s32.totalorder %s17, 3
      %p83 = por %p81, %p82
      %p84 = scmp.ne.s32.totalorder %s76, %s79
      %p85 = scmp.eq.s32.totalorder %s17, 0
      %p86 = por %p84, %p85
      %p87 = scmp.ne.s32.totalorder %s76, %s79
      %p88 = scmp.eq.s32.totalorder %s22, 3
      %p89 = por %p87, %p88
      %p90 = scmp.ne.s32.totalorder %s79, %s80
      %p91 = scmp.eq.s32.totalorder %s22, 0
      %p92 = por %p90, %p91
      %p93 = scmp.ne.s32.totalorder %s79, %s80
      %p94 = scmp.eq.s32.totalorder %s23, 3
      %p95 = por %p93, %p94
      %p97 = scmp.ne.s32.totalorder %s80, %s96
      %p98 = scmp.eq.s32.totalorder %s23, 0
      %p99 = por %p97, %p98
      %s100 = ssub.s32 %s24, %s43
      %s101 = ssub.s32 %s25, %s39
      %s102 = sor.u32 %s100, %s101
      %p103 = scmp.eq.s32.totalorder %s102, 0
      %s105 = sadd.s32 %s104, 1
      %s106 = scalar_select %p103, %s104, %s105
      %p109 = pneg %p103
      %p110 = scmp.eq.s32.totalorder %s17, 3
      %p111 = por %p109, %p110
      %p112 = scmp.ne.s32.totalorder %s104, %s107
      %p113 = scmp.eq.s32.totalorder %s17, 0
      %p114 = por %p112, %p113
      %p115 = scmp.ne.s32.totalorder %s104, %s107
      %p116 = scmp.eq.s32.totalorder %s22, 3
      %p117 = por %p115, %p116
      %p118 = scmp.ne.s32.totalorder %s107, %s108
      %p119 = scmp.eq.s32.totalorder %s22, 0
      %p120 = por %p118, %p119
      %p121 = scmp.ne.s32.totalorder %s107, %s108
      %p122 = scmp.eq.s32.totalorder %s23, 3
      %p123 = por %p121, %p122
      %p125 = scmp.ne.s32.totalorder %s108, %s124
      %p126 = scmp.eq.s32.totalorder %s23, 0
      %p127 = por %p125, %p126
      %s128 = ssub.s32 %s24, %s43
      %s129 = ssub.s32 %s25, %s39
      %s130 = sor.u32 %s128, %s129
      %p131 = scmp.eq.s32.totalorder %s130, 0
      %s133 = sadd.s32 %s132, 1
      %s134 = scalar_select %p131, %s132, %s133
      %p137 = pneg %p131
      %p138 = scmp.eq.s32.totalorder %s17, 3
      %p139 = por %p137, %p138
      %p140 = scmp.ne.s32.totalorder %s132, %s135
      %p141 = scmp.eq.s32.totalorder %s17, 0
      %p142 = por %p140, %p141
      %p143 = scmp.ne.s32.totalorder %s132, %s135
      %p144 = scmp.eq.s32.totalorder %s22, 3
      %p145 = por %p143, %p144
      %p146 = scmp.ne.s32.totalorder %s135, %s136
      %p147 = scmp.eq.s32.totalorder %s22, 0
      %p148 = por %p146, %p147
      %p149 = scmp.ne.s32.totalorder %s135, %s136
      %p150 = scmp.eq.s32.totalorder %s23, 3
      %p151 = por %p149, %p150
      %p153 = scmp.ne.s32.totalorder %s136, %s152
      %p154 = scmp.eq.s32.totalorder %s23, 0
      %p155 = por %p153, %p154
      %s156 = ssub.s32 %s24, %s43
      %s157 = ssub.s32 %s25, %s39
      %s158 = sor.u32 %s156, %s157
      %p159 = scmp.eq.s32.totalorder %s158, 0
      %s161 = sadd.s32 %s160, 1
      %s162 = scalar_select %p159, %s160, %s161
      %p165 = pneg %p159
      %p166 = scmp.eq.s32.totalorder %s17, 3
      %p167 = por %p165, %p166
      %p168 = scmp.ne.s32.totalorder %s160, %s163
      %p169 = scmp.eq.s32.totalorder %s17, 0
      %p170 = por %p168, %p169
      %p171 = scmp.ne.s32.totalorder %s160, %s163
      %p172 = scmp.eq.s32.totalorder %s22, 3
      %p173 = por %p171, %p172
      %p174 = scmp.ne.s32.totalorder %s163, %s164
      %p175 = scmp.eq.s32.totalorder %s22, 0
      %p176 = por %p174, %p175
      %p177 = scmp.ne.s32.totalorder %s163, %s164
      %p178 = scmp.eq.s32.totalorder %s23, 3
      %p179 = por %p177, %p178
      %p181 = scmp.ne.s32.totalorder %s164, %s180
      %p182 = scmp.eq.s32.totalorder %s23, 0
      %p183 = por %p181, %p182
      %p184 = scmp.le.s32.totalorder 1, %s17
      %p185 = scmp.lt.s32.totalorder %s17, 5
      %p186 = pnand %p184, %p185
      %p187 = pneg %p186
      // Predicated region
      $region9: #{tpu_custom_call.1} parent=5 // pred_check
        _
      $region10: #{tpu_custom_call.1} parent=5 // pred_check_branch
        %189 = sbr.rel (%p186) target = $region12
      $region11: #{tpu_custom_call.1} parent=5 // pred_region
        %s190 = ssub.s32 %s17, 1
        // Predicated region
        $region13: #{tpu_custom_call.1} parent=11 // pred_check
          %p191 = pneg %p92
        $region14: #{tpu_custom_call.1} parent=11 // pred_check_branch
          %193 = sbr.rel (%p191) target = $region16
        $region15: #{tpu_custom_call.1} parent=11 // pred_region
          %s194 = smul.u32 19, %s29
          %p195 = scmp.lt.s32.totalorder %s194, 18
          %s196 = scalar_select %p195, %s194, 18
          %p197 = scmp.lt.s32.totalorder %s28, 0
          %s198 = scalar_select %p197, %s28, 0
          %s199 = sadd.s32 %s198, %s196
          %s200 = smul.addr %s199, 4
          %s201 = scalar_lea.vmem %s1, %s200
          %s202 = smul.u32 19, %s29
        $region16: #{tpu_custom_call.1} parent=11 // pred_fallthru
          _
      $region12: #{tpu_custom_call.1} parent=5 // pred_fallthru
        _
      %p203 = scmp.lt.s32.totalorder %s17, 4
      // Predicated region
      $region17: #{tpu_custom_call.1} parent=5 // pred_check
        %p204 = pneg %p203
      $region18: #{tpu_custom_call.1} parent=5 // pred_check_branch
        %206 = sbr.rel (%p204) target = $region20
      $region19: #{tpu_custom_call.1} parent=5 // pred_region
        // Predicated region
        $region21: #{tpu_custom_call.1} parent=19 // pred_check
          %p207 = pneg %p58
        $region22: #{tpu_custom_call.1} parent=19 // pred_check_branch
          %209 = sbr.rel (%p207) target = $region24
        $region23: #{tpu_custom_call.1} parent=19 // pred_region
          %s210 = smul.u32 64, %s24
          %s211 = smul.u32 2, %s26
          %p212 = scmp.lt.s32.totalorder %s210, 255
          %s213 = scalar_select %p212, %s210, 255
          %p214 = scmp.lt.s32.totalorder %s211, 1
          %s215 = scalar_select %p214, %s211, 1
          %s216 = smul.addr %s213, 2
          %s217 = sadd.s32 %s215, %s216
          %s218 = smul.addr %s217, 4
          %s219 = scalar_lea.vmem %s0, %s218
          %s220 = smul.u32 64, %s24
          %s221 = smul.u32 2, %s26
        $region24: #{tpu_custom_call.1} parent=19 // pred_fallthru
          _
      $region20: #{tpu_custom_call.1} parent=5 // pred_fallthru
        _
      %p222 = scmp.le.s32.totalorder 1, %s17
      %p223 = scmp.lt.s32.totalorder %s17, 5
      %p224 = pnand %p222, %p223
      %p225 = pneg %p224
      // Predicated region
      $region25: #{tpu_custom_call.1} parent=5 // pred_check
        _
      $region26: #{tpu_custom_call.1} parent=5 // pred_check_branch
        %227 = sbr.rel (%p224) target = $region28
      $region27: #{tpu_custom_call.1} parent=5 // pred_region
        %s228 = ssub.s32 %s17, 1
        %s229 = smul.u32 64, %s27
        %s230 = smul.u32 2, %s29
        %p231 = scmp.lt.s32.totalorder %s229, 255
        %s232 = scalar_select %p231, %s229, 255
        %p233 = scmp.lt.s32.totalorder %s230, 1
        %s234 = scalar_select %p233, %s230, 1
        %s235 = smul.addr %s232, 2
        %s236 = sadd.s32 %s234, %s235
        %s237 = smul.addr %s236, 4
        %s238 = scalar_lea.vmem %s0, %s237
        %p239 = pneg %p64
        %p240 = pneg %p61
        %s241 = smul.u32 19, %s29
        %p242 = scmp.lt.s32.totalorder %s241, 18
        %s243 = scalar_select %p242, %s241, 18
        %p244 = scmp.lt.s32.totalorder %s28, 0
        %s245 = scalar_select %p244, %s28, 0
        %s246 = sadd.s32 %s245, %s243
        %s247 = smul.addr %s246, 4
        %s248 = scalar_lea.vmem %s1, %s247
        %p249 = pneg %p92
        %p250 = pneg %p89
        %p251 = pneg %p120
        %p252 = pneg %p117
        %s253 = smul.u32 64, %s27
        %p254 = scmp.lt.s32.totalorder %s253, 255
        %s255 = scalar_select %p254, %s253, 255
        %p256 = scmp.lt.s32.totalorder %s28, 0
        %s257 = scalar_select %p256, %s28, 0
        %s258 = sadd.s32 %s257, %s255
        %s259 = smul.addr %s258, 4
        %s260 = scalar_lea.vmem %s2, %s259
        %p261 = pneg %p148
        %p262 = pneg %p145
        %s263 = sand.u32 %s135, 1
        %s264 = scalar_lea.sflag [#allocation4], %s263
        %s265 = sand.u32 %s135, 1
        %s266 = scalar_lea.vmem [#allocation3], %s265
        %p267 = pneg %p176
        %p268 = pneg %p173
        %s269 = sand.u32 %s163, 1
        %s270 = scalar_lea.sflag [#allocation6], %s269
        %s271 = sand.u32 %s163, 1
        %s272 = scalar_lea.vmem [#allocation5], %s271
        %s273 = smul.u32 64, %s27
        %s274 = smul.u32 2, %s29
        %p275 = scmp.lt.s32.totalorder %s273, 255
        %s276 = scalar_select %p275, %s273, 255
        %p277 = scmp.lt.s32.totalorder %s274, 1
        %s278 = scalar_select %p277, %s274, 1
        %s279 = smul.addr %s276, 2
        %s280 = sadd.s32 %s278, %s279
        %s281 = smul.addr %s280, 4
        %s282 = scalar_lea.vmem %s0, %s281
        %s283 = smul.u32 64, %s27
        %s284 = smul.u32 2, %s29
        %s285 = smul.u32 19, %s29
        %p286 = scmp.lt.s32.totalorder %s285, 18
        %s287 = scalar_select %p286, %s285, 18
        %p288 = scmp.lt.s32.totalorder %s28, 0
        %s289 = scalar_select %p288, %s28, 0
        %s290 = sadd.s32 %s289, %s287
        %s291 = smul.addr %s290, 4
        %s292 = scalar_lea.vmem %s1, %s291
        %s293 = smul.u32 19, %s29
        %s294 = smul.u32 64, %s27
        %p295 = scmp.lt.s32.totalorder %s294, 255
        %s296 = scalar_select %p295, %s294, 255
        %p297 = scmp.lt.s32.totalorder %s28, 0
        %s298 = scalar_select %p297, %s28, 0
        %s299 = sadd.s32 %s298, %s296
        %s300 = smul.addr %s299, 4
        %s301 = scalar_lea.vmem %s2, %s300
        %s302 = smul.u32 64, %s27
        %p304 = scmp.eq.s32.totalorder %s29, 0
        // Predicated region
        $region29: #{tpu_custom_call.1} parent=27 // pred_check
          %p305 = pneg %p304
        $region30: #{tpu_custom_call.1} parent=27 // pred_check_branch
          %307 = sbr.rel (%p305) target = $region32
        $region31: #{tpu_custom_call.1} parent=27 // pred_region
          %vm308 = vcmask 523264
          %309 = vst.msk [vmem:[#allocation2] sm:$0xff] %vm308, 0.0
          %310 = vst.msk [vmem:[#allocation2 + $0x8] sm:$0xff] %vm308, 0.0
          %311 = vst.msk [vmem:[#allocation2 + $0x10] sm:$0xff] %vm308, 0.0
          %312 = vst.msk [vmem:[#allocation2 + $0x18] sm:$0xff] %vm308, 0.0
          %313 = vst.msk [vmem:[#allocation2 + $0x20] sm:$0xff] %vm308, 0.0
          %314 = vst.msk [vmem:[#allocation2 + $0x28] sm:$0xff] %vm308, 0.0
          %315 = vst.msk [vmem:[#allocation2 + $0x30] sm:$0xff] %vm308, 0.0
          %316 = vst.msk [vmem:[#allocation2 + $0x38] sm:$0xff] %vm308, 0.0
          %317 = vst.msk [vmem:[#allocation2 + $0x40] sm:$0xff] %vm308, 0.0
          %318 = vst.msk [vmem:[#allocation2 + $0x48] sm:$0xff] %vm308, 0.0
          %319 = vst.msk [vmem:[#allocation2 + $0x50] sm:$0xff] %vm308, 0.0
          %320 = vst.msk [vmem:[#allocation2 + $0x58] sm:$0xff] %vm308, 0.0
          %321 = vst.msk [vmem:[#allocation2 + $0x60] sm:$0xff] %vm308, 0.0
          %322 = vst.msk [vmem:[#allocation2 + $0x68] sm:$0xff] %vm308, 0.0
          %323 = vst.msk [vmem:[#allocation2 + $0x70] sm:$0xff] %vm308, 0.0
          %324 = vst.msk [vmem:[#allocation2 + $0x78] sm:$0xff] %vm308, 0.0
          %325 = vst.msk [vmem:[#allocation2 + $0x80] sm:$0xff] %vm308, 0.0
          %326 = vst.msk [vmem:[#allocation2 + $0x88] sm:$0xff] %vm308, 0.0
          %327 = vst.msk [vmem:[#allocation2 + $0x90] sm:$0xff] %vm308, 0.0
          %328 = vst.msk [vmem:[#allocation2 + $0x98] sm:$0xff] %vm308, 0.0
          %329 = vst.msk [vmem:[#allocation2 + $0xa0] sm:$0xff] %vm308, 0.0
          %330 = vst.msk [vmem:[#allocation2 + $0xa8] sm:$0xff] %vm308, 0.0
          %331 = vst.msk [vmem:[#allocation2 + $0xb0] sm:$0xff] %vm308, 0.0
          %332 = vst.msk [vmem:[#allocation2 + $0xb8] sm:$0xff] %vm308, 0.0
          %333 = vst.msk [vmem:[#allocation2 + $0xc0] sm:$0xff] %vm308, 0.0
          %334 = vst.msk [vmem:[#allocation2 + $0xc8] sm:$0xff] %vm308, 0.0
          %335 = vst.msk [vmem:[#allocation2 + $0xd0] sm:$0xff] %vm308, 0.0
          %336 = vst.msk [vmem:[#allocation2 + $0xd8] sm:$0xff] %vm308, 0.0
          %337 = vst.msk [vmem:[#allocation2 + $0xe0] sm:$0xff] %vm308, 0.0
          %338 = vst.msk [vmem:[#allocation2 + $0xe8] sm:$0xff] %vm308, 0.0
          %339 = vst.msk [vmem:[#allocation2 + $0xf0] sm:$0xff] %vm308, 0.0
          %340 = vst.msk [vmem:[#allocation2 + $0xf8] sm:$0xff] %vm308, 0.0
          %341 = vst.msk [vmem:[#allocation2 + $0x100] sm:$0xff] %vm308, 0.0
          %342 = vst.msk [vmem:[#allocation2 + $0x108] sm:$0xff] %vm308, 0.0
          %343 = vst.msk [vmem:[#allocation2 + $0x110] sm:$0xff] %vm308, 0.0
          %344 = vst.msk [vmem:[#allocation2 + $0x118] sm:$0xff] %vm308, 0.0
          %345 = vst.msk [vmem:[#allocation2 + $0x120] sm:$0xff] %vm308, 0.0
          %346 = vst.msk [vmem:[#allocation2 + $0x128] sm:$0xff] %vm308, 0.0
          %347 = vst.msk [vmem:[#allocation2 + $0x130] sm:$0xff] %vm308, 0.0
          %348 = vst.msk [vmem:[#allocation2 + $0x138] sm:$0xff] %vm308, 0.0
          %349 = vst.msk [vmem:[#allocation2 + $0x140] sm:$0xff] %vm308, 0.0
          %350 = vst.msk [vmem:[#allocation2 + $0x148] sm:$0xff] %vm308, 0.0
          %351 = vst.msk [vmem:[#allocation2 + $0x150] sm:$0xff] %vm308, 0.0
          %352 = vst.msk [vmem:[#allocation2 + $0x158] sm:$0xff] %vm308, 0.0
          %353 = vst.msk [vmem:[#allocation2 + $0x160] sm:$0xff] %vm308, 0.0
          %354 = vst.msk [vmem:[#allocation2 + $0x168] sm:$0xff] %vm308, 0.0
          %355 = vst.msk [vmem:[#allocation2 + $0x170] sm:$0xff] %vm308, 0.0
          %356 = vst.msk [vmem:[#allocation2 + $0x178] sm:$0xff] %vm308, 0.0
          %357 = vst.msk [vmem:[#allocation2 + $0x180] sm:$0xff] %vm308, 0.0
          %358 = vst.msk [vmem:[#allocation2 + $0x188] sm:$0xff] %vm308, 0.0
          %359 = vst.msk [vmem:[#allocation2 + $0x190] sm:$0xff] %vm308, 0.0
          %360 = vst.msk [vmem:[#allocation2 + $0x198] sm:$0xff] %vm308, 0.0
          %361 = vst.msk [vmem:[#allocation2 + $0x1a0] sm:$0xff] %vm308, 0.0
          %362 = vst.msk [vmem:[#allocation2 + $0x1a8] sm:$0xff] %vm308, 0.0
          %363 = vst.msk [vmem:[#allocation2 + $0x1b0] sm:$0xff] %vm308, 0.0
          %364 = vst.msk [vmem:[#allocation2 + $0x1b8] sm:$0xff] %vm308, 0.0
          %365 = vst.msk [vmem:[#allocation2 + $0x1c0] sm:$0xff] %vm308, 0.0
          %366 = vst.msk [vmem:[#allocation2 + $0x1c8] sm:$0xff] %vm308, 0.0
          %367 = vst.msk [vmem:[#allocation2 + $0x1d0] sm:$0xff] %vm308, 0.0
          %368 = vst.msk [vmem:[#allocation2 + $0x1d8] sm:$0xff] %vm308, 0.0
          %369 = vst.msk [vmem:[#allocation2 + $0x1e0] sm:$0xff] %vm308, 0.0
          %370 = vst.msk [vmem:[#allocation2 + $0x1e8] sm:$0xff] %vm308, 0.0
          %371 = vst.msk [vmem:[#allocation2 + $0x1f0] sm:$0xff] %vm308, 0.0
          %372 = vst.msk [vmem:[#allocation2 + $0x1f8] sm:$0xff] %vm308, 0.0
        $region32: #{tpu_custom_call.1} parent=27 // pred_fallthru
          _
        %v373 = vld [vmem:[#allocation2] sm:$0xff]
        %v374 = vld [vmem:[#allocation2 + $0x8] sm:$0xff]
        %v375 = vld [vmem:[#allocation2 + $0x10] sm:$0xff]
        %v376 = vld [vmem:[#allocation2 + $0x18] sm:$0xff]
        %v377 = vld [vmem:[#allocation2 + $0x20] sm:$0xff]
        %v378 = vld [vmem:[#allocation2 + $0x28] sm:$0xff]
        %v379 = vld [vmem:[#allocation2 + $0x30] sm:$0xff]
        %v380 = vld [vmem:[#allocation2 + $0x38] sm:$0xff]
        %v381 = vld [vmem:[#allocation2 + $0x40] sm:$0xff]
        %v382 = vld [vmem:[#allocation2 + $0x48] sm:$0xff]
        %v383 = vld [vmem:[#allocation2 + $0x50] sm:$0xff]
        %v384 = vld [vmem:[#allocation2 + $0x58] sm:$0xff]
        %v385 = vld [vmem:[#allocation2 + $0x60] sm:$0xff]
        %v386 = vld [vmem:[#allocation2 + $0x68] sm:$0xff]
        %v387 = vld [vmem:[#allocation2 + $0x70] sm:$0xff]
        %v388 = vld [vmem:[#allocation2 + $0x78] sm:$0xff]
        %v389 = vld [vmem:[#allocation2 + $0x80] sm:$0xff]
        %v390 = vld [vmem:[#allocation2 + $0x88] sm:$0xff]
        %v391 = vld [vmem:[#allocation2 + $0x90] sm:$0xff]
        %v392 = vld [vmem:[#allocation2 + $0x98] sm:$0xff]
        %v393 = vld [vmem:[#allocation2 + $0xa0] sm:$0xff]
        %v394 = vld [vmem:[#allocation2 + $0xa8] sm:$0xff]
        %v395 = vld [vmem:[#allocation2 + $0xb0] sm:$0xff]
        %v396 = vld [vmem:[#allocation2 + $0xb8] sm:$0xff]
        %v397 = vld [vmem:[#allocation2 + $0xc0] sm:$0xff]
        %v398 = vld [vmem:[#allocation2 + $0xc8] sm:$0xff]
        %v399 = vld [vmem:[#allocation2 + $0xd0] sm:$0xff]
        %v400 = vld [vmem:[#allocation2 + $0xd8] sm:$0xff]
        %v401 = vld [vmem:[#allocation2 + $0xe0] sm:$0xff]
        %v402 = vld [vmem:[#allocation2 + $0xe8] sm:$0xff]
        %v403 = vld [vmem:[#allocation2 + $0xf0] sm:$0xff]
        %v404 = vld [vmem:[#allocation2 + $0xf8] sm:$0xff]
        %v405 = vld [vmem:[#allocation2 + $0x100] sm:$0xff]
        %v406 = vld [vmem:[#allocation2 + $0x108] sm:$0xff]
        %v407 = vld [vmem:[#allocation2 + $0x110] sm:$0xff]
        %v408 = vld [vmem:[#allocation2 + $0x118] sm:$0xff]
        %v409 = vld [vmem:[#allocation2 + $0x120] sm:$0xff]
        %v410 = vld [vmem:[#allocation2 + $0x128] sm:$0xff]
        %v411 = vld [vmem:[#allocation2 + $0x130] sm:$0xff]
        %v412 = vld [vmem:[#allocation2 + $0x138] sm:$0xff]
        %v413 = vld [vmem:[#allocation2 + $0x140] sm:$0xff]
        %v414 = vld [vmem:[#allocation2 + $0x148] sm:$0xff]
        %v415 = vld [vmem:[#allocation2 + $0x150] sm:$0xff]
        %v416 = vld [vmem:[#allocation2 + $0x158] sm:$0xff]
        %v417 = vld [vmem:[#allocation2 + $0x160] sm:$0xff]
        %v418 = vld [vmem:[#allocation2 + $0x168] sm:$0xff]
        %v419 = vld [vmem:[#allocation2 + $0x170] sm:$0xff]
        %v420 = vld [vmem:[#allocation2 + $0x178] sm:$0xff]
        %v421 = vld [vmem:[#allocation2 + $0x180] sm:$0xff]
        %v422 = vld [vmem:[#allocation2 + $0x188] sm:$0xff]
        %v423 = vld [vmem:[#allocation2 + $0x190] sm:$0xff]
        %v424 = vld [vmem:[#allocation2 + $0x198] sm:$0xff]
        %v425 = vld [vmem:[#allocation2 + $0x1a0] sm:$0xff]
        %v426 = vld [vmem:[#allocation2 + $0x1a8] sm:$0xff]
        %v427 = vld [vmem:[#allocation2 + $0x1b0] sm:$0xff]
        %v428 = vld [vmem:[#allocation2 + $0x1b8] sm:$0xff]
        %v429 = vld [vmem:[#allocation2 + $0x1c0] sm:$0xff]
        %v430 = vld [vmem:[#allocation2 + $0x1c8] sm:$0xff]
        %v431 = vld [vmem:[#allocation2 + $0x1d0] sm:$0xff]
        %v432 = vld [vmem:[#allocation2 + $0x1d8] sm:$0xff]
        %v433 = vld [vmem:[#allocation2 + $0x1e0] sm:$0xff]
        %v434 = vld [vmem:[#allocation2 + $0x1e8] sm:$0xff]
        %v435 = vld [vmem:[#allocation2 + $0x1f0] sm:$0xff]
        %v436 = vld [vmem:[#allocation2 + $0x1f8] sm:$0xff]
        %v437 = vld [vmem:[%s282] sm:$0xff]
        %v438 = vld [vmem:[%s282 + $0x8] sm:$0xff]
        %v439 = vld [vmem:[%s282 + $0x10] sm:$0xff]
        %v440 = vld [vmem:[%s282 + $0x18] sm:$0xff]
        %v441 = vld [vmem:[%s282 + $0x20] sm:$0xff]
        %v442 = vld [vmem:[%s282 + $0x28] sm:$0xff]
        %v443 = vld [vmem:[%s282 + $0x30] sm:$0xff]
        %v444 = vld [vmem:[%s282 + $0x38] sm:$0xff]
        %v445 = vld [vmem:[%s282 + $0x40] sm:$0xff]
        %v446 = vld [vmem:[%s282 + $0x48] sm:$0xff]
        %v447 = vld [vmem:[%s282 + $0x50] sm:$0xff]
        %v448 = vld [vmem:[%s282 + $0x58] sm:$0xff]
        %v449 = vld [vmem:[%s282 + $0x60] sm:$0xff]
        %v450 = vld [vmem:[%s282 + $0x68] sm:$0xff]
        %v451 = vld [vmem:[%s282 + $0x70] sm:$0xff]
        %v452 = vld [vmem:[%s282 + $0x78] sm:$0xff]
        %v453 = vld [vmem:[%s282 + $0x80] sm:$0xff]
        %v454 = vld [vmem:[%s282 + $0x88] sm:$0xff]
        %v455 = vld [vmem:[%s282 + $0x90] sm:$0xff]
        %v456 = vld [vmem:[%s282 + $0x98] sm:$0xff]
        %v457 = vld [vmem:[%s282 + $0xa0] sm:$0xff]
        %v458 = vld [vmem:[%s282 + $0xa8] sm:$0xff]
        %v459 = vld [vmem:[%s282 + $0xb0] sm:$0xff]
        %v460 = vld [vmem:[%s282 + $0xb8] sm:$0xff]
        %v461 = vld [vmem:[%s282 + $0xc0] sm:$0xff]
        %v462 = vld [vmem:[%s282 + $0xc8] sm:$0xff]
        %v463 = vld [vmem:[%s282 + $0xd0] sm:$0xff]
        %v464 = vld [vmem:[%s282 + $0xd8] sm:$0xff]
        %v465 = vld [vmem:[%s282 + $0xe0] sm:$0xff]
        %v466 = vld [vmem:[%s282 + $0xe8] sm:$0xff]
        %v467 = vld [vmem:[%s282 + $0xf0] sm:$0xff]
        %v468 = vld [vmem:[%s282 + $0xf8] sm:$0xff]
        %v469 = vld [vmem:[%s282 + $0x100] sm:$0xff]
        %v470 = vld [vmem:[%s282 + $0x108] sm:$0xff]
        %v471 = vld [vmem:[%s282 + $0x110] sm:$0xff]
        %v472 = vld [vmem:[%s282 + $0x118] sm:$0xff]
        %v473 = vld [vmem:[%s282 + $0x120] sm:$0xff]
        %v474 = vld [vmem:[%s282 + $0x128] sm:$0xff]
        %v475 = vld [vmem:[%s282 + $0x130] sm:$0xff]
        %v476 = vld [vmem:[%s282 + $0x138] sm:$0xff]
        %v477 = vld [vmem:[%s282 + $0x140] sm:$0xff]
        %v478 = vld [vmem:[%s282 + $0x148] sm:$0xff]
        %v479 = vld [vmem:[%s282 + $0x150] sm:$0xff]
        %v480 = vld [vmem:[%s282 + $0x158] sm:$0xff]
        %v481 = vld [vmem:[%s282 + $0x160] sm:$0xff]
        %v482 = vld [vmem:[%s282 + $0x168] sm:$0xff]
        %v483 = vld [vmem:[%s282 + $0x170] sm:$0xff]
        %v484 = vld [vmem:[%s282 + $0x178] sm:$0xff]
        %v485 = vld [vmem:[%s282 + $0x180] sm:$0xff]
        %v486 = vld [vmem:[%s282 + $0x188] sm:$0xff]
        %v487 = vld [vmem:[%s282 + $0x190] sm:$0xff]
        %v488 = vld [vmem:[%s282 + $0x198] sm:$0xff]
        %v489 = vld [vmem:[%s282 + $0x1a0] sm:$0xff]
        %v490 = vld [vmem:[%s282 + $0x1a8] sm:$0xff]
        %v491 = vld [vmem:[%s282 + $0x1b0] sm:$0xff]
        %v492 = vld [vmem:[%s282 + $0x1b8] sm:$0xff]
        %v493 = vld [vmem:[%s282 + $0x1c0] sm:$0xff]
        %v494 = vld [vmem:[%s282 + $0x1c8] sm:$0xff]
        %v495 = vld [vmem:[%s282 + $0x1d0] sm:$0xff]
        %v496 = vld [vmem:[%s282 + $0x1d8] sm:$0xff]
        %v497 = vld [vmem:[%s282 + $0x1e0] sm:$0xff]
        %v498 = vld [vmem:[%s282 + $0x1e8] sm:$0xff]
        %v499 = vld [vmem:[%s282 + $0x1f0] sm:$0xff]
        %v500 = vld [vmem:[%s282 + $0x1f8] sm:$0xff]
        %v501 = vld [vmem:[%s292] sm:$0xf]
        %v502 = vld [vmem:[%s292 + $0x4] sm:$0xf]
        %v503 = vld [vmem:[%s292 + $0x8] sm:$0xf]
        %v504 = vld [vmem:[%s292 + $0xc] sm:$0xf]
        %v505 = vld [vmem:[%s292 + $0x10] sm:$0xf]
        %v506 = vld [vmem:[%s292 + $0x14] sm:$0xf]
        %v507 = vld [vmem:[%s292 + $0x18] sm:$0xf]
        %v508 = vld [vmem:[%s292 + $0x1c] sm:$0xf]
        %v509 = vld [vmem:[%s292 + $0x20] sm:$0xf]
        %v510 = vld [vmem:[%s292 + $0x24] sm:$0xf]
        %v511 = vld [vmem:[%s292 + $0x28] sm:$0xf]
        %v512 = vld [vmem:[%s292 + $0x2c] sm:$0xf]
        %v513 = vld [vmem:[%s292 + $0x30] sm:$0xf]
        %v514 = vld [vmem:[%s292 + $0x34] sm:$0xf]
        %v515 = vld [vmem:[%s292 + $0x38] sm:$0xf]
        %v516 = vld [vmem:[%s292 + $0x3c] sm:$0xf]
        %v517 = vld [vmem:[%s292 + $0x40] sm:$0xf]
        %v518 = vld [vmem:[%s292 + $0x44] sm:$0xf]
        %v519 = vld [vmem:[%s292 + $0x48] sm:$0x3]
        %v584 = vunpack.c.l.b16 %v437
        %v585 = vunpack.c.h.b16 %v437
        %v586 = vunpack.c.l.b16 %v438
        %v587 = vunpack.c.h.b16 %v438
        %v588 = vunpack.c.l.b16 %v439
        %v589 = vunpack.c.h.b16 %v439
        %v590 = vunpack.c.l.b16 %v440
        %v591 = vunpack.c.h.b16 %v440
        %v592 = vunpack.c.l.b16 %v441
        %v593 = vunpack.c.h.b16 %v441
        %v594 = vunpack.c.l.b16 %v442
        %v595 = vunpack.c.h.b16 %v442
        %v596 = vunpack.c.l.b16 %v443
        %v597 = vunpack.c.h.b16 %v443
        %v598 = vunpack.c.l.b16 %v444
        %v599 = vunpack.c.h.b16 %v444
        %v600 = vunpack.c.l.b16 %v445
        %v601 = vunpack.c.h.b16 %v445
        %v602 = vunpack.c.l.b16 %v446
        %v603 = vunpack.c.h.b16 %v446
        %v604 = vunpack.c.l.b16 %v447
        %v605 = vunpack.c.h.b16 %v447
        %v606 = vunpack.c.l.b16 %v448
        %v607 = vunpack.c.h.b16 %v448
        %v608 = vunpack.c.l.b16 %v449
        %v609 = vunpack.c.h.b16 %v449
        %v610 = vunpack.c.l.b16 %v450
        %v611 = vunpack.c.h.b16 %v450
        %v612 = vunpack.c.l.b16 %v451
        %v613 = vunpack.c.h.b16 %v451
        %v614 = vunpack.c.l.b16 %v452
        %v615 = vunpack.c.h.b16 %v452
        %v616 = vunpack.c.l.b16 %v453
        %v617 = vunpack.c.h.b16 %v453
        %v618 = vunpack.c.l.b16 %v454
        %v619 = vunpack.c.h.b16 %v454
        %v620 = vunpack.c.l.b16 %v455
        %v621 = vunpack.c.h.b16 %v455
        %v622 = vunpack.c.l.b16 %v456
        %v623 = vunpack.c.h.b16 %v456
        %v624 = vunpack.c.l.b16 %v457
        %v625 = vunpack.c.h.b16 %v457
        %v626 = vunpack.c.l.b16 %v458
        %v627 = vunpack.c.h.b16 %v458
        %v628 = vunpack.c.l.b16 %v459
        %v629 = vunpack.c.h.b16 %v459
        %v630 = vunpack.c.l.b16 %v460
        %v631 = vunpack.c.h.b16 %v460
        %v632 = vunpack.c.l.b16 %v461
        %v633 = vunpack.c.h.b16 %v461
        %v634 = vunpack.c.l.b16 %v462
        %v635 = vunpack.c.h.b16 %v462
        %v636 = vunpack.c.l.b16 %v463
        %v637 = vunpack.c.h.b16 %v463
        %v638 = vunpack.c.l.b16 %v464
        %v639 = vunpack.c.h.b16 %v464
        %v640 = vunpack.c.l.b16 %v465
        %v641 = vunpack.c.h.b16 %v465
        %v642 = vunpack.c.l.b16 %v466
        %v643 = vunpack.c.h.b16 %v466
        %v644 = vunpack.c.l.b16 %v467
        %v645 = vunpack.c.h.b16 %v467
        %v646 = vunpack.c.l.b16 %v468
        %v647 = vunpack.c.h.b16 %v468
        %v648 = vunpack.c.l.b16 %v469
        %v649 = vunpack.c.h.b16 %v469
        %v650 = vunpack.c.l.b16 %v470
        %v651 = vunpack.c.h.b16 %v470
        %v652 = vunpack.c.l.b16 %v471
        %v653 = vunpack.c.h.b16 %v471
        %v654 = vunpack.c.l.b16 %v472
        %v655 = vunpack.c.h.b16 %v472
        %v656 = vunpack.c.l.b16 %v473
        %v657 = vunpack.c.h.b16 %v473
        %v658 = vunpack.c.l.b16 %v474
        %v659 = vunpack.c.h.b16 %v474
        %v660 = vunpack.c.l.b16 %v475
        %v661 = vunpack.c.h.b16 %v475
        %v662 = vunpack.c.l.b16 %v476
        %v663 = vunpack.c.h.b16 %v476
        %v664 = vunpack.c.l.b16 %v477
        %v665 = vunpack.c.h.b16 %v477
        %v666 = vunpack.c.l.b16 %v478
        %v667 = vunpack.c.h.b16 %v478
        %v668 = vunpack.c.l.b16 %v479
        %v669 = vunpack.c.h.b16 %v479
        %v670 = vunpack.c.l.b16 %v480
        %v671 = vunpack.c.h.b16 %v480
        %v672 = vunpack.c.l.b16 %v481
        %v673 = vunpack.c.h.b16 %v481
        %v674 = vunpack.c.l.b16 %v482
        %v675 = vunpack.c.h.b16 %v482
        %v676 = vunpack.c.l.b16 %v483
        %v677 = vunpack.c.h.b16 %v483
        %v678 = vunpack.c.l.b16 %v484
        %v679 = vunpack.c.h.b16 %v484
        %v680 = vunpack.c.l.b16 %v485
        %v681 = vunpack.c.h.b16 %v485
        %v682 = vunpack.c.l.b16 %v486
        %v683 = vunpack.c.h.b16 %v486
        %v684 = vunpack.c.l.b16 %v487
        %v685 = vunpack.c.h.b16 %v487
        %v686 = vunpack.c.l.b16 %v488
        %v687 = vunpack.c.h.b16 %v488
        %v688 = vunpack.c.l.b16 %v489
        %v689 = vunpack.c.h.b16 %v489
        %v690 = vunpack.c.l.b16 %v490
        %v691 = vunpack.c.h.b16 %v490
        %v692 = vunpack.c.l.b16 %v491
        %v693 = vunpack.c.h.b16 %v491
        %v694 = vunpack.c.l.b16 %v492
        %v695 = vunpack.c.h.b16 %v492
        %v696 = vunpack.c.l.b16 %v493
        %v697 = vunpack.c.h.b16 %v493
        %v698 = vunpack.c.l.b16 %v494
        %v699 = vunpack.c.h.b16 %v494
        %v700 = vunpack.c.l.b16 %v495
        %v701 = vunpack.c.h.b16 %v495
        %v702 = vunpack.c.l.b16 %v496
        %v703 = vunpack.c.h.b16 %v496
        %v704 = vunpack.c.l.b16 %v497
        %v705 = vunpack.c.h.b16 %v497
        %v706 = vunpack.c.l.b16 %v498
        %v707 = vunpack.c.h.b16 %v498
        %v708 = vunpack.c.l.b16 %v499
        %v709 = vunpack.c.h.b16 %v499
        %v710 = vunpack.c.l.b16 %v500
        %v711 = vunpack.c.h.b16 %v500
        %v712 = vpack.c.b16 %v586, %v584
        %v713 = vpack.c.b16 %v587, %v585
        %v714 = vpack.c.b16 %v590, %v588
        %v715 = vpack.c.b16 %v591, %v589
        %v716 = vpack.c.b16 %v594, %v592
        %v717 = vpack.c.b16 %v595, %v593
        %v718 = vpack.c.b16 %v598, %v596
        %v719 = vpack.c.b16 %v599, %v597
        %v720 = vpack.c.b16 %v602, %v600
        %v721 = vpack.c.b16 %v603, %v601
        %v722 = vpack.c.b16 %v606, %v604
        %v723 = vpack.c.b16 %v607, %v605
        %v724 = vpack.c.b16 %v610, %v608
        %v725 = vpack.c.b16 %v611, %v609
        %v726 = vpack.c.b16 %v614, %v612
        %v727 = vpack.c.b16 %v615, %v613
        %v728 = vpack.c.b16 %v618, %v616
        %v729 = vpack.c.b16 %v619, %v617
        %v730 = vpack.c.b16 %v622, %v620
        %v731 = vpack.c.b16 %v623, %v621
        %v732 = vpack.c.b16 %v626, %v624
        %v733 = vpack.c.b16 %v627, %v625
        %v734 = vpack.c.b16 %v630, %v628
        %v735 = vpack.c.b16 %v631, %v629
        %v736 = vpack.c.b16 %v634, %v632
        %v737 = vpack.c.b16 %v635, %v633
        %v738 = vpack.c.b16 %v638, %v636
        %v739 = vpack.c.b16 %v639, %v637
        %v740 = vpack.c.b16 %v642, %v640
        %v741 = vpack.c.b16 %v643, %v641
        %v742 = vpack.c.b16 %v646, %v644
        %v743 = vpack.c.b16 %v647, %v645
        %v744 = vpack.c.b16 %v650, %v648
        %v745 = vpack.c.b16 %v651, %v649
        %v746 = vpack.c.b16 %v654, %v652
        %v747 = vpack.c.b16 %v655, %v653
        %v748 = vpack.c.b16 %v658, %v656
        %v749 = vpack.c.b16 %v659, %v657
        %v750 = vpack.c.b16 %v662, %v660
        %v751 = vpack.c.b16 %v663, %v661
        %v752 = vpack.c.b16 %v666, %v664
        %v753 = vpack.c.b16 %v667, %v665
        %v754 = vpack.c.b16 %v670, %v668
        %v755 = vpack.c.b16 %v671, %v669
        %v756 = vpack.c.b16 %v674, %v672
        %v757 = vpack.c.b16 %v675, %v673
        %v758 = vpack.c.b16 %v678, %v676
        %v759 = vpack.c.b16 %v679, %v677
        %v760 = vpack.c.b16 %v682, %v680
        %v761 = vpack.c.b16 %v683, %v681
        %v762 = vpack.c.b16 %v686, %v684
        %v763 = vpack.c.b16 %v687, %v685
        %v764 = vpack.c.b16 %v690, %v688
        %v765 = vpack.c.b16 %v691, %v689
        %v766 = vpack.c.b16 %v694, %v692
        %v767 = vpack.c.b16 %v695, %v693
        %v768 = vpack.c.b16 %v698, %v696
        %v769 = vpack.c.b16 %v699, %v697
        %v770 = vpack.c.b16 %v702, %v700
        %v771 = vpack.c.b16 %v703, %v701
        %v772 = vpack.c.b16 %v706, %v704
        %v773 = vpack.c.b16 %v707, %v705
        %v774 = vpack.c.b16 %v710, %v708
        %v775 = vpack.c.b16 %v711, %v709
        %v827 = vunpack.c.l.b16 %v501
        %v828 = vunpack.c.l.b16 %v502
        %v829 = vunpack.c.l.b16 %v503
        %v830 = vunpack.c.l.b16 %v504
        %v831 = vunpack.c.l.b16 %v505
        %v832 = vunpack.c.l.b16 %v506
        %v833 = vunpack.c.l.b16 %v507
        %v834 = vunpack.c.l.b16 %v508
        %v835 = vunpack.c.l.b16 %v509
        %v836 = vunpack.c.l.b16 %v510
        %v837 = vunpack.c.l.b16 %v511
        %v838 = vunpack.c.l.b16 %v512
        %v839 = vunpack.c.l.b16 %v513
        %v840 = vunpack.c.l.b16 %v514
        %v841 = vunpack.c.l.b16 %v515
        %v842 = vunpack.c.l.b16 %v516
        %v843 = vunpack.c.l.b16 %v517
        %v844 = vunpack.c.l.b16 %v518
        %v845 = vunpack.c.l.b16 %v519
        %v846 = vpack.c.b16 %v828, %v827
        %v847 = vpack.c.b16 %v830, %v829
        %v848 = vpack.c.b16 %v832, %v831
        %v849 = vpack.c.b16 %v834, %v833
        %v850 = vpack.c.b16 %v836, %v835
        %v851 = vpack.c.b16 %v838, %v837
        %v852 = vpack.c.b16 %v840, %v839
        %v853 = vpack.c.b16 %v842, %v841
        %v854 = vpack.c.b16 %v844, %v843
        %v855 = vpack.c.b16 %v845, %v845
        %vm865 = vcmask 154624
        %v867 = vsel %vm865, %v713, 0
        %v870 = vsel %vm865, %v715, 0
        %v873 = vsel %vm865, %v717, 0
        %v876 = vsel %vm865, %v719, 0
        %v879 = vsel %vm865, %v721, 0
        %v882 = vsel %vm865, %v723, 0
        %v885 = vsel %vm865, %v725, 0
        %v888 = vsel %vm865, %v727, 0
        %v891 = vsel %vm865, %v729, 0
        %v894 = vsel %vm865, %v731, 0
        %v897 = vsel %vm865, %v733, 0
        %v900 = vsel %vm865, %v735, 0
        %v903 = vsel %vm865, %v737, 0
        %v906 = vsel %vm865, %v739, 0
        %v909 = vsel %vm865, %v741, 0
        %v912 = vsel %vm865, %v743, 0
        %v915 = vsel %vm865, %v745, 0
        %v918 = vsel %vm865, %v747, 0
        %v921 = vsel %vm865, %v749, 0
        %v924 = vsel %vm865, %v751, 0
        %v927 = vsel %vm865, %v753, 0
        %v930 = vsel %vm865, %v755, 0
        %v933 = vsel %vm865, %v757, 0
        %v936 = vsel %vm865, %v759, 0
        %v939 = vsel %vm865, %v761, 0
        %v942 = vsel %vm865, %v763, 0
        %v945 = vsel %vm865, %v765, 0
        %v948 = vsel %vm865, %v767, 0
        %v951 = vsel %vm865, %v769, 0
        %v954 = vsel %vm865, %v771, 0
        %v957 = vsel %vm865, %v773, 0
        %v960 = vsel %vm865, %v775, 0
        %vm962 = vcmask 1040384
        %vm963 = vcmask 1041408
        %v964 = vsel %vm962, 4294967295, 65535
        %v965 = vsel %vm963, %v964, 0
        %v967 = vand.u32 %v855, %v965
        %969 = vmatprep.subr.bf16.mxu0 0
        %970 = vmatpush1.bf16.msra.mxu0 %v846
        %971 = vmatprep.subr.bf16.mxu0 0
        %972 = vmatpush1.bf16.msra.mxu0 %v847
        %973 = vmatprep.subr.bf16.mxu0 0
        %974 = vmatpush1.bf16.msra.mxu0 %v848
        %975 = vmatprep.subr.bf16.mxu0 0
        %976 = vmatpush1.bf16.msra.mxu0 %v849
        %977 = vmatprep.subr.bf16.mxu0 0
        %978 = vmatpush1.bf16.msra.mxu0 %v850
        %979 = vmatprep.subr.bf16.mxu0 0
        %980 = vmatpush1.bf16.msra.mxu0 %v851
        %981 = vmatprep.subr.bf16.mxu0 0
        %982 = vmatpush1.bf16.msra.mxu0 %v852
        %983 = vmatprep.subr.bf16.mxu0 0
        %984 = vmatpush1.bf16.msra.mxu0 %v853
        %985 = vmatprep.subr.bf16.mxu0 0
        %986 = vmatpush1.bf16.msra.mxu0 %v854
        %987 = vmatprep.subr.bf16.mxu0 0
        %988 = vmatpush1.bf16.msra.mxu0 %v967
        %989 = vmatprep.subr.bf16.mxu0 0
        %990 = vmatpush1.bf16.msra.mxu0 0
        %991 = vmatprep.subr.bf16.mxu0 0
        %992 = vmatpush1.bf16.msra.mxu0 0
        %993 = vmatprep.subr.bf16.mxu0 0
        %994 = vmatpush1.bf16.msra.mxu0 0
        %995 = vmatprep.subr.bf16.mxu0 0
        %996 = vmatpush1.bf16.msra.mxu0 0
        %997 = vmatprep.subr.bf16.mxu0 0
        %998 = vmatpush1.bf16.msra.mxu0 0
        %999 = vmatprep.subr.bf16.mxu0 0
        %1000 = vmatpush1.bf16.msra.mxu0 0
        %1001 = vmatprep.mubr.bf16.mxu0 %v867
        %1002 = vmatmul.mubr.bf16.gmra.mrb[0].mxu0 %v712
        %v1003 = vpop.f32.mrb[0].mxu0
        %v1004 = vadd.f32 0.0, %v1003
        %v1005 = vpop.f32.mrb[0].mxu0
        %v1006 = vpop.f32.mrb[0].mxu0
        %v1007 = vadd.f32 0.0, %v1006
        %v1008 = vpop.f32.mrb[0].mxu0
        %1009 = vmatprep.mubr.bf16.mxu0 %v870
        %1010 = vmatmul.mubr.bf16.gmra.mrb[0].mxu0 %v714
        %v1011 = vpop.f32.mrb[0].mxu0
        %v1012 = vadd.f32 0.0, %v1011
        %v1013 = vpop.f32.mrb[0].mxu0
        %v1014 = vpop.f32.mrb[0].mxu0
        %v1015 = vadd.f32 0.0, %v1014
        %v1016 = vpop.f32.mrb[0].mxu0
        %1017 = vmatprep.mubr.bf16.mxu0 %v873
        %1018 = vmatmul.mubr.bf16.gmra.mrb[0].mxu0 %v716
        %v1019 = vpop.f32.mrb[0].mxu0
        %v1020 = vadd.f32 0.0, %v1019
        %v1021 = vpop.f32.mrb[0].mxu0
        %v1022 = vpop.f32.mrb[0].mxu0
        %v1023 = vadd.f32 0.0, %v1022
        %v1024 = vpop.f32.mrb[0].mxu0
        %1025 = vmatprep.mubr.bf16.mxu0 %v876
        %1026 = vmatmul.mubr.bf16.gmra.mrb[0].mxu0 %v718
        %v1027 = vpop.f32.mrb[0].mxu0
        %v1028 = vadd.f32 0.0, %v1027
        %v1029 = vpop.f32.mrb[0].mxu0
        %v1030 = vpop.f32.mrb[0].mxu0
        %v1031 = vadd.f32 0.0, %v1030
        %v1032 = vpop.f32.mrb[0].mxu0
        %1033 = vmatprep.mubr.bf16.mxu0 %v879
        %1034 = vmatmul.mubr.bf16.gmra.mrb[0].mxu0 %v720
        %v1035 = vpop.f32.mrb[0].mxu0
        %v1036 = vadd.f32 0.0, %v1035
        %v1037 = vpop.f32.mrb[0].mxu0
        %v1038 = vpop.f32.mrb[0].mxu0
        %v1039 = vadd.f32 0.0, %v1038
        %v1040 = vpop.f32.mrb[0].mxu0
        %1041 = vmatprep.mubr.bf16.mxu0 %v882
        %1042 = vmatmul.mubr.bf16.gmra.mrb[0].mxu0 %v722
        %v1043 = vpop.f32.mrb[0].mxu0
        %v1044 = vadd.f32 0.0, %v1043
        %v1045 = vpop.f32.mrb[0].mxu0
        %v1046 = vpop.f32.mrb[0].mxu0
        %v1047 = vadd.f32 0.0, %v1046
        %v1048 = vpop.f32.mrb[0].mxu0
        %1049 = vmatprep.mubr.bf16.mxu0 %v885
        %1050 = vmatmul.mubr.bf16.gmra.mrb[0].mxu0 %v724
        %v1051 = vpop.f32.mrb[0].mxu0
        %v1052 = vadd.f32 0.0, %v1051
        %v1053 = vpop.f32.mrb[0].mxu0
        %v1054 = vpop.f32.mrb[0].mxu0
        %v1055 = vadd.f32 0.0, %v1054
        %v1056 = vpop.f32.mrb[0].mxu0
        %1057 = vmatprep.mubr.bf16.mxu0 %v888
        %1058 = vmatmul.mubr.bf16.gmra.mrb[0].mxu0 %v726
        %v1059 = vpop.f32.mrb[0].mxu0
        %v1060 = vadd.f32 0.0, %v1059
        %v1061 = vpop.f32.mrb[0].mxu0
        %v1062 = vpop.f32.mrb[0].mxu0
        %v1063 = vadd.f32 0.0, %v1062
        %v1064 = vpop.f32.mrb[0].mxu0
        %1065 = vmatprep.mubr.bf16.mxu0 %v891
        %1066 = vmatmul.mubr.bf16.gmra.mrb[0].mxu0 %v728
        %v1067 = vpop.f32.mrb[0].mxu0
        %v1068 = vadd.f32 0.0, %v1067
        %v1069 = vpop.f32.mrb[0].mxu0
        %v1070 = vpop.f32.mrb[0].mxu0
        %v1071 = vadd.f32 0.0, %v1070
        %v1072 = vpop.f32.mrb[0].mxu0
        %1073 = vmatprep.mubr.bf16.mxu0 %v894
        %1074 = vmatmul.mubr.bf16.gmra.mrb[0].mxu0 %v730
        %v1075 = vpop.f32.mrb[0].mxu0
        %v1076 = vadd.f32 0.0, %v1075
        %v1077 = vpop.f32.mrb[0].mxu0
        %v1078 = vpop.f32.mrb[0].mxu0
        %v1079 = vadd.f32 0.0, %v1078
        %v1080 = vpop.f32.mrb[0].mxu0
        %1081 = vmatprep.mubr.bf16.mxu0 %v897
        %1082 = vmatmul.mubr.bf16.gmra.mrb[0].mxu0 %v732
        %v1083 = vpop.f32.mrb[0].mxu0
        %v1084 = vadd.f32 0.0, %v1083
        %v1085 = vpop.f32.mrb[0].mxu0
        %v1086 = vpop.f32.mrb[0].mxu0
        %v1087 = vadd.f32 0.0, %v1086
        %v1088 = vpop.f32.mrb[0].mxu0
        %1089 = vmatprep.mubr.bf16.mxu0 %v900
        %1090 = vmatmul.mubr.bf16.gmra.mrb[0].mxu0 %v734
        %v1091 = vpop.f32.mrb[0].mxu0
        %v1092 = vadd.f32 0.0, %v1091
        %v1093 = vpop.f32.mrb[0].mxu0
        %v1094 = vpop.f32.mrb[0].mxu0
        %v1095 = vadd.f32 0.0, %v1094
        %v1096 = vpop.f32.mrb[0].mxu0
        %1097 = vmatprep.mubr.bf16.mxu0 %v903
        %1098 = vmatmul.mubr.bf16.gmra.mrb[0].mxu0 %v736
        %v1099 = vpop.f32.mrb[0].mxu0
        %v1100 = vadd.f32 0.0, %v1099
        %v1101 = vpop.f32.mrb[0].mxu0
        %v1102 = vpop.f32.mrb[0].mxu0
        %v1103 = vadd.f32 0.0, %v1102
        %v1104 = vpop.f32.mrb[0].mxu0
        %1105 = vmatprep.mubr.bf16.mxu0 %v906
        %1106 = vmatmul.mubr.bf16.gmra.mrb[0].mxu0 %v738
        %v1107 = vpop.f32.mrb[0].mxu0
        %v1108 = vadd.f32 0.0, %v1107
        %v1109 = vpop.f32.mrb[0].mxu0
        %v1110 = vpop.f32.mrb[0].mxu0
        %v1111 = vadd.f32 0.0, %v1110
        %v1112 = vpop.f32.mrb[0].mxu0
        %1113 = vmatprep.mubr.bf16.mxu0 %v909
        %1114 = vmatmul.mubr.bf16.gmra.mrb[0].mxu0 %v740
        %v1115 = vpop.f32.mrb[0].mxu0
        %v1116 = vadd.f32 0.0, %v1115
        %v1117 = vpop.f32.mrb[0].mxu0
        %v1118 = vpop.f32.mrb[0].mxu0
        %v1119 = vadd.f32 0.0, %v1118
        %v1120 = vpop.f32.mrb[0].mxu0
        %1121 = vmatprep.mubr.bf16.mxu0 %v912
        %1122 = vmatmul.mubr.bf16.gmra.mrb[0].mxu0 %v742
        %v1123 = vpop.f32.mrb[0].mxu0
        %v1124 = vadd.f32 0.0, %v1123
        %v1125 = vpop.f32.mrb[0].mxu0
        %v1126 = vpop.f32.mrb[0].mxu0
        %v1127 = vadd.f32 0.0, %v1126
        %v1128 = vpop.f32.mrb[0].mxu0
        %1129 = vmatprep.mubr.bf16.mxu0 %v915
        %1130 = vmatmul.mubr.bf16.gmra.mrb[0].mxu0 %v744
        %v1131 = vpop.f32.mrb[0].mxu0
        %v1132 = vadd.f32 0.0, %v1131
        %v1133 = vpop.f32.mrb[0].mxu0
        %v1134 = vpop.f32.mrb[0].mxu0
        %v1135 = vadd.f32 0.0, %v1134
        %v1136 = vpop.f32.mrb[0].mxu0
        %1137 = vmatprep.mubr.bf16.mxu0 %v918
        %1138 = vmatmul.mubr.bf16.gmra.mrb[0].mxu0 %v746
        %v1139 = vpop.f32.mrb[0].mxu0
        %v1140 = vadd.f32 0.0, %v1139
        %v1141 = vpop.f32.mrb[0].mxu0
        %v1142 = vpop.f32.mrb[0].mxu0
        %v1143 = vadd.f32 0.0, %v1142
        %v1144 = vpop.f32.mrb[0].mxu0
        %1145 = vmatprep.mubr.bf16.mxu0 %v921
        %1146 = vmatmul.mubr.bf16.gmra.mrb[0].mxu0 %v748
        %v1147 = vpop.f32.mrb[0].mxu0
        %v1148 = vadd.f32 0.0, %v1147
        %v1149 = vpop.f32.mrb[0].mxu0
        %v1150 = vpop.f32.mrb[0].mxu0
        %v1151 = vadd.f32 0.0, %v1150
        %v1152 = vpop.f32.mrb[0].mxu0
        %1153 = vmatprep.mubr.bf16.mxu0 %v924
        %1154 = vmatmul.mubr.bf16.gmra.mrb[0].mxu0 %v750
        %v1155 = vpop.f32.mrb[0].mxu0
        %v1156 = vadd.f32 0.0, %v1155
        %v1157 = vpop.f32.mrb[0].mxu0
        %v1158 = vpop.f32.mrb[0].mxu0
        %v1159 = vadd.f32 0.0, %v1158
        %v1160 = vpop.f32.mrb[0].mxu0
        %1161 = vmatprep.mubr.bf16.mxu0 %v927
        %1162 = vmatmul.mubr.bf16.gmra.mrb[0].mxu0 %v752
        %v1163 = vpop.f32.mrb[0].mxu0
        %v1164 = vadd.f32 0.0, %v1163
        %v1165 = vpop.f32.mrb[0].mxu0
        %v1166 = vpop.f32.mrb[0].mxu0
        %v1167 = vadd.f32 0.0, %v1166
        %v1168 = vpop.f32.mrb[0].mxu0
        %1169 = vmatprep.mubr.bf16.mxu0 %v930
        %1170 = vmatmul.mubr.bf16.gmra.mrb[0].mxu0 %v754
        %v1171 = vpop.f32.mrb[0].mxu0
        %v1172 = vadd.f32 0.0, %v1171
        %v1173 = vpop.f32.mrb[0].mxu0
        %v1174 = vpop.f32.mrb[0].mxu0
        %v1175 = vadd.f32 0.0, %v1174
        %v1176 = vpop.f32.mrb[0].mxu0
        %1177 = vmatprep.mubr.bf16.mxu0 %v933
        %1178 = vmatmul.mubr.bf16.gmra.mrb[0].mxu0 %v756
        %v1179 = vpop.f32.mrb[0].mxu0
        %v1180 = vadd.f32 0.0, %v1179
        %v1181 = vpop.f32.mrb[0].mxu0
        %v1182 = vpop.f32.mrb[0].mxu0
        %v1183 = vadd.f32 0.0, %v1182
        %v1184 = vpop.f32.mrb[0].mxu0
        %1185 = vmatprep.mubr.bf16.mxu0 %v936
        %1186 = vmatmul.mubr.bf16.gmra.mrb[0].mxu0 %v758
        %v1187 = vpop.f32.mrb[0].mxu0
        %v1188 = vadd.f32 0.0, %v1187
        %v1189 = vpop.f32.mrb[0].mxu0
        %v1190 = vpop.f32.mrb[0].mxu0
        %v1191 = vadd.f32 0.0, %v1190
        %v1192 = vpop.f32.mrb[0].mxu0
        %1193 = vmatprep.mubr.bf16.mxu0 %v939
        %1194 = vmatmul.mubr.bf16.gmra.mrb[0].mxu0 %v760
        %v1195 = vpop.f32.mrb[0].mxu0
        %v1196 = vadd.f32 0.0, %v1195
        %v1197 = vpop.f32.mrb[0].mxu0
        %v1198 = vpop.f32.mrb[0].mxu0
        %v1199 = vadd.f32 0.0, %v1198
        %v1200 = vpop.f32.mrb[0].mxu0
        %1201 = vmatprep.mubr.bf16.mxu0 %v942
        %1202 = vmatmul.mubr.bf16.gmra.mrb[0].mxu0 %v762
        %v1203 = vpop.f32.mrb[0].mxu0
        %v1204 = vadd.f32 0.0, %v1203
        %v1205 = vpop.f32.mrb[0].mxu0
        %v1206 = vpop.f32.mrb[0].mxu0
        %v1207 = vadd.f32 0.0, %v1206
        %v1208 = vpop.f32.mrb[0].mxu0
        %1209 = vmatprep.mubr.bf16.mxu0 %v945
        %1210 = vmatmul.mubr.bf16.gmra.mrb[0].mxu0 %v764
        %v1211 = vpop.f32.mrb[0].mxu0
        %v1212 = vadd.f32 0.0, %v1211
        %v1213 = vpop.f32.mrb[0].mxu0
        %v1214 = vpop.f32.mrb[0].mxu0
        %v1215 = vadd.f32 0.0, %v1214
        %v1216 = vpop.f32.mrb[0].mxu0
        %1217 = vmatprep.mubr.bf16.mxu0 %v948
        %1218 = vmatmul.mubr.bf16.gmra.mrb[0].mxu0 %v766
        %v1219 = vpop.f32.mrb[0].mxu0
        %v1220 = vadd.f32 0.0, %v1219
        %v1221 = vpop.f32.mrb[0].mxu0
        %v1222 = vpop.f32.mrb[0].mxu0
        %v1223 = vadd.f32 0.0, %v1222
        %v1224 = vpop.f32.mrb[0].mxu0
        %1225 = vmatprep.mubr.bf16.mxu0 %v951
        %1226 = vmatmul.mubr.bf16.gmra.mrb[0].mxu0 %v768
        %v1227 = vpop.f32.mrb[0].mxu0
        %v1228 = vadd.f32 0.0, %v1227
        %v1229 = vpop.f32.mrb[0].mxu0
        %v1230 = vpop.f32.mrb[0].mxu0
        %v1231 = vadd.f32 0.0, %v1230
        %v1232 = vpop.f32.mrb[0].mxu0
        %1233 = vmatprep.mubr.bf16.mxu0 %v954
        %1234 = vmatmul.mubr.bf16.gmra.mrb[0].mxu0 %v770
        %v1235 = vpop.f32.mrb[0].mxu0
        %v1236 = vadd.f32 0.0, %v1235
        %v1237 = vpop.f32.mrb[0].mxu0
        %v1238 = vpop.f32.mrb[0].mxu0
        %v1239 = vadd.f32 0.0, %v1238
        %v1240 = vpop.f32.mrb[0].mxu0
        %1241 = vmatprep.mubr.bf16.mxu0 %v957
        %1242 = vmatmul.mubr.bf16.gmra.mrb[0].mxu0 %v772
        %v1243 = vpop.f32.mrb[0].mxu0
        %v1244 = vadd.f32 0.0, %v1243
        %v1245 = vpop.f32.mrb[0].mxu0
        %v1246 = vpop.f32.mrb[0].mxu0
        %v1247 = vadd.f32 0.0, %v1246
        %v1248 = vpop.f32.mrb[0].mxu0
        %1249 = vmatprep.mubr.bf16.mxu0 %v960
        %1250 = vmatmul.mubr.bf16.gmra.mrb[0].mxu0 %v774
        %v1251 = vpop.f32.mrb[0].mxu0
        %v1252 = vadd.f32 0.0, %v1251
        %v1253 = vpop.f32.mrb[0].mxu0
        %v1254 = vpop.f32.mrb[0].mxu0
        %v1255 = vadd.f32 0.0, %v1254
        %v1256 = vpop.f32.mrb[0].mxu0
        %1257 = vdwg.mxu0
        %v1258 = vadd.f32 %v373, %v1004
        %v1259 = vadd.f32 %v374, %v1007
        %v1260 = vadd.f32 %v375, %v1012
        %v1261 = vadd.f32 %v376, %v1015
        %v1262 = vadd.f32 %v377, %v1020
        %v1263 = vadd.f32 %v378, %v1023
        %v1264 = vadd.f32 %v379, %v1028
        %v1265 = vadd.f32 %v380, %v1031
        %v1266 = vadd.f32 %v381, %v1036
        %v1267 = vadd.f32 %v382, %v1039
        %v1268 = vadd.f32 %v383, %v1044
        %v1269 = vadd.f32 %v384, %v1047
        %v1270 = vadd.f32 %v385, %v1052
        %v1271 = vadd.f32 %v386, %v1055
        %v1272 = vadd.f32 %v387, %v1060
        %v1273 = vadd.f32 %v388, %v1063
        %v1274 = vadd.f32 %v389, %v1068
        %v1275 = vadd.f32 %v390, %v1071
        %v1276 = vadd.f32 %v391, %v1076
        %v1277 = vadd.f32 %v392, %v1079
        %v1278 = vadd.f32 %v393, %v1084
        %v1279 = vadd.f32 %v394, %v1087
        %v1280 = vadd.f32 %v395, %v1092
        %v1281 = vadd.f32 %v396, %v1095
        %v1282 = vadd.f32 %v397, %v1100
        %v1283 = vadd.f32 %v398, %v1103
        %v1284 = vadd.f32 %v399, %v1108
        %v1285 = vadd.f32 %v400, %v1111
        %v1286 = vadd.f32 %v401, %v1116
        %v1287 = vadd.f32 %v402, %v1119
        %v1288 = vadd.f32 %v403, %v1124
        %v1289 = vadd.f32 %v404, %v1127
        %v1290 = vadd.f32 %v405, %v1132
        %v1291 = vadd.f32 %v406, %v1135
        %v1292 = vadd.f32 %v407, %v1140
        %v1293 = vadd.f32 %v408, %v1143
        %v1294 = vadd.f32 %v409, %v1148
        %v1295 = vadd.f32 %v410, %v1151
        %v1296 = vadd.f32 %v411, %v1156
        %v1297 = vadd.f32 %v412, %v1159
        %v1298 = vadd.f32 %v413, %v1164
        %v1299 = vadd.f32 %v414, %v1167
        %v1300 = vadd.f32 %v415, %v1172
        %v1301 = vadd.f32 %v416, %v1175
        %v1302 = vadd.f32 %v417, %v1180
        %v1303 = vadd.f32 %v418, %v1183
        %v1304 = vadd.f32 %v419, %v1188
        %v1305 = vadd.f32 %v420, %v1191
        %v1306 = vadd.f32 %v421, %v1196
        %v1307 = vadd.f32 %v422, %v1199
        %v1308 = vadd.f32 %v423, %v1204
        %v1309 = vadd.f32 %v424, %v1207
        %v1310 = vadd.f32 %v425, %v1212
        %v1311 = vadd.f32 %v426, %v1215
        %v1312 = vadd.f32 %v427, %v1220
        %v1313 = vadd.f32 %v428, %v1223
        %v1314 = vadd.f32 %v429, %v1228
        %v1315 = vadd.f32 %v430, %v1231
        %v1316 = vadd.f32 %v431, %v1236
        %v1317 = vadd.f32 %v432, %v1239
        %v1318 = vadd.f32 %v433, %v1244
        %v1319 = vadd.f32 %v434, %v1247
        %v1320 = vadd.f32 %v435, %v1252
        %v1321 = vadd.f32 %v436, %v1255
        %vm1322 = vcmask 523264
        %1323 = vst.msk [vmem:[#allocation2] sm:$0xff] %vm1322, %v1258
        %1324 = vst.msk [vmem:[#allocation2 + $0x8] sm:$0xff] %vm1322, %v1259
        %1325 = vst.msk [vmem:[#allocation2 + $0x10] sm:$0xff] %vm1322, %v1260
        %1326 = vst.msk [vmem:[#allocation2 + $0x18] sm:$0xff] %vm1322, %v1261
        %1327 = vst.msk [vmem:[#allocation2 + $0x20] sm:$0xff] %vm1322, %v1262
        %1328 = vst.msk [vmem:[#allocation2 + $0x28] sm:$0xff] %vm1322, %v1263
        %1329 = vst.msk [vmem:[#allocation2 + $0x30] sm:$0xff] %vm1322, %v1264
        %1330 = vst.msk [vmem:[#allocation2 + $0x38] sm:$0xff] %vm1322, %v1265
        %1331 = vst.msk [vmem:[#allocation2 + $0x40] sm:$0xff] %vm1322, %v1266
        %1332 = vst.msk [vmem:[#allocation2 + $0x48] sm:$0xff] %vm1322, %v1267
        %1333 = vst.msk [vmem:[#allocation2 + $0x50] sm:$0xff] %vm1322, %v1268
        %1334 = vst.msk [vmem:[#allocation2 + $0x58] sm:$0xff] %vm1322, %v1269
        %1335 = vst.msk [vmem:[#allocation2 + $0x60] sm:$0xff] %vm1322, %v1270
        %1336 = vst.msk [vmem:[#allocation2 + $0x68] sm:$0xff] %vm1322, %v1271
        %1337 = vst.msk [vmem:[#allocation2 + $0x70] sm:$0xff] %vm1322, %v1272
        %1338 = vst.msk [vmem:[#allocation2 + $0x78] sm:$0xff] %vm1322, %v1273
        %1339 = vst.msk [vmem:[#allocation2 + $0x80] sm:$0xff] %vm1322, %v1274
        %1340 = vst.msk [vmem:[#allocation2 + $0x88] sm:$0xff] %vm1322, %v1275
        %1341 = vst.msk [vmem:[#allocation2 + $0x90] sm:$0xff] %vm1322, %v1276
        %1342 = vst.msk [vmem:[#allocation2 + $0x98] sm:$0xff] %vm1322, %v1277
        %1343 = vst.msk [vmem:[#allocation2 + $0xa0] sm:$0xff] %vm1322, %v1278
        %1344 = vst.msk [vmem:[#allocation2 + $0xa8] sm:$0xff] %vm1322, %v1279
        %1345 = vst.msk [vmem:[#allocation2 + $0xb0] sm:$0xff] %vm1322, %v1280
        %1346 = vst.msk [vmem:[#allocation2 + $0xb8] sm:$0xff] %vm1322, %v1281
        %1347 = vst.msk [vmem:[#allocation2 + $0xc0] sm:$0xff] %vm1322, %v1282
        %1348 = vst.msk [vmem:[#allocation2 + $0xc8] sm:$0xff] %vm1322, %v1283
        %1349 = vst.msk [vmem:[#allocation2 + $0xd0] sm:$0xff] %vm1322, %v1284
        %1350 = vst.msk [vmem:[#allocation2 + $0xd8] sm:$0xff] %vm1322, %v1285
        %1351 = vst.msk [vmem:[#allocation2 + $0xe0] sm:$0xff] %vm1322, %v1286
        %1352 = vst.msk [vmem:[#allocation2 + $0xe8] sm:$0xff] %vm1322, %v1287
        %1353 = vst.msk [vmem:[#allocation2 + $0xf0] sm:$0xff] %vm1322, %v1288
        %1354 = vst.msk [vmem:[#allocation2 + $0xf8] sm:$0xff] %vm1322, %v1289
        %1355 = vst.msk [vmem:[#allocation2 + $0x100] sm:$0xff] %vm1322, %v1290
        %1356 = vst.msk [vmem:[#allocation2 + $0x108] sm:$0xff] %vm1322, %v1291
        %1357 = vst.msk [vmem:[#allocation2 + $0x110] sm:$0xff] %vm1322, %v1292
        %1358 = vst.msk [vmem:[#allocation2 + $0x118] sm:$0xff] %vm1322, %v1293
        %1359 = vst.msk [vmem:[#allocation2 + $0x120] sm:$0xff] %vm1322, %v1294
        %1360 = vst.msk [vmem:[#allocation2 + $0x128] sm:$0xff] %vm1322, %v1295
        %1361 = vst.msk [vmem:[#allocation2 + $0x130] sm:$0xff] %vm1322, %v1296
        %1362 = vst.msk [vmem:[#allocation2 + $0x138] sm:$0xff] %vm1322, %v1297
        %1363 = vst.msk [vmem:[#allocation2 + $0x140] sm:$0xff] %vm1322, %v1298
        %1364 = vst.msk [vmem:[#allocation2 + $0x148] sm:$0xff] %vm1322, %v1299
        %1365 = vst.msk [vmem:[#allocation2 + $0x150] sm:$0xff] %vm1322, %v1300
        %1366 = vst.msk [vmem:[#allocation2 + $0x158] sm:$0xff] %vm1322, %v1301
        %1367 = vst.msk [vmem:[#allocation2 + $0x160] sm:$0xff] %vm1322, %v1302
        %1368 = vst.msk [vmem:[#allocation2 + $0x168] sm:$0xff] %vm1322, %v1303
        %1369 = vst.msk [vmem:[#allocation2 + $0x170] sm:$0xff] %vm1322, %v1304
        %1370 = vst.msk [vmem:[#allocation2 + $0x178] sm:$0xff] %vm1322, %v1305
        %1371 = vst.msk [vmem:[#allocation2 + $0x180] sm:$0xff] %vm1322, %v1306
        %1372 = vst.msk [vmem:[#allocation2 + $0x188] sm:$0xff] %vm1322, %v1307
        %1373 = vst.msk [vmem:[#allocation2 + $0x190] sm:$0xff] %vm1322, %v1308
        %1374 = vst.msk [vmem:[#allocation2 + $0x198] sm:$0xff] %vm1322, %v1309
        %1375 = vst.msk [vmem:[#allocation2 + $0x1a0] sm:$0xff] %vm1322, %v1310
        %1376 = vst.msk [vmem:[#allocation2 + $0x1a8] sm:$0xff] %vm1322, %v1311
        %1377 = vst.msk [vmem:[#allocation2 + $0x1b0] sm:$0xff] %vm1322, %v1312
        %1378 = vst.msk [vmem:[#allocation2 + $0x1b8] sm:$0xff] %vm1322, %v1313
        %1379 = vst.msk [vmem:[#allocation2 + $0x1c0] sm:$0xff] %vm1322, %v1314
        %1380 = vst.msk [vmem:[#allocation2 + $0x1c8] sm:$0xff] %vm1322, %v1315
        %1381 = vst.msk [vmem:[#allocation2 + $0x1d0] sm:$0xff] %vm1322, %v1316
        %1382 = vst.msk [vmem:[#allocation2 + $0x1d8] sm:$0xff] %vm1322, %v1317
        %1383 = vst.msk [vmem:[#allocation2 + $0x1e0] sm:$0xff] %vm1322, %v1318
        %1384 = vst.msk [vmem:[#allocation2 + $0x1e8] sm:$0xff] %vm1322, %v1319
        %1385 = vst.msk [vmem:[#allocation2 + $0x1f0] sm:$0xff] %vm1322, %v1320
        %1386 = vst.msk [vmem:[#allocation2 + $0x1f8] sm:$0xff] %vm1322, %v1321
        // Predicated region
        $region33: #{tpu_custom_call.1} parent=27 // pred_check
          %p1387 = pneg %p304
        $region34: #{tpu_custom_call.1} parent=27 // pred_check_branch
          %1389 = sbr.rel (%p1387) target = $region36
        $region35: #{tpu_custom_call.1} parent=27 // pred_region
          %v1390 = vld [vmem:[#allocation2] sm:$0xff]
          %v1391 = vld [vmem:[#allocation2 + $0x8] sm:$0xff]
          %v1392 = vld [vmem:[#allocation2 + $0x10] sm:$0xff]
          %v1393 = vld [vmem:[#allocation2 + $0x18] sm:$0xff]
          %v1394 = vld [vmem:[#allocation2 + $0x20] sm:$0xff]
          %v1395 = vld [vmem:[#allocation2 + $0x28] sm:$0xff]
          %v1396 = vld [vmem:[#allocation2 + $0x30] sm:$0xff]
          %v1397 = vld [vmem:[#allocation2 + $0x38] sm:$0xff]
          %v1398 = vld [vmem:[#allocation2 + $0x40] sm:$0xff]
          %v1399 = vld [vmem:[#allocation2 + $0x48] sm:$0xff]
          %v1400 = vld [vmem:[#allocation2 + $0x50] sm:$0xff]
          %v1401 = vld [vmem:[#allocation2 + $0x58] sm:$0xff]
          %v1402 = vld [vmem:[#allocation2 + $0x60] sm:$0xff]
          %v1403 = vld [vmem:[#allocation2 + $0x68] sm:$0xff]
          %v1404 = vld [vmem:[#allocation2 + $0x70] sm:$0xff]
          %v1405 = vld [vmem:[#allocation2 + $0x78] sm:$0xff]
          %v1406 = vld [vmem:[#allocation2 + $0x80] sm:$0xff]
          %v1407 = vld [vmem:[#allocation2 + $0x88] sm:$0xff]
          %v1408 = vld [vmem:[#allocation2 + $0x90] sm:$0xff]
          %v1409 = vld [vmem:[#allocation2 + $0x98] sm:$0xff]
          %v1410 = vld [vmem:[#allocation2 + $0xa0] sm:$0xff]
          %v1411 = vld [vmem:[#allocation2 + $0xa8] sm:$0xff]
          %v1412 = vld [vmem:[#allocation2 + $0xb0] sm:$0xff]
          %v1413 = vld [vmem:[#allocation2 + $0xb8] sm:$0xff]
          %v1414 = vld [vmem:[#allocation2 + $0xc0] sm:$0xff]
          %v1415 = vld [vmem:[#allocation2 + $0xc8] sm:$0xff]
          %v1416 = vld [vmem:[#allocation2 + $0xd0] sm:$0xff]
          %v1417 = vld [vmem:[#allocation2 + $0xd8] sm:$0xff]
          %v1418 = vld [vmem:[#allocation2 + $0xe0] sm:$0xff]
          %v1419 = vld [vmem:[#allocation2 + $0xe8] sm:$0xff]
          %v1420 = vld [vmem:[#allocation2 + $0xf0] sm:$0xff]
          %v1421 = vld [vmem:[#allocation2 + $0xf8] sm:$0xff]
          %v1422 = vld [vmem:[#allocation2 + $0x100] sm:$0xff]
          %v1423 = vld [vmem:[#allocation2 + $0x108] sm:$0xff]
          %v1424 = vld [vmem:[#allocation2 + $0x110] sm:$0xff]
          %v1425 = vld [vmem:[#allocation2 + $0x118] sm:$0xff]
          %v1426 = vld [vmem:[#allocation2 + $0x120] sm:$0xff]
          %v1427 = vld [vmem:[#allocation2 + $0x128] sm:$0xff]
          %v1428 = vld [vmem:[#allocation2 + $0x130] sm:$0xff]
          %v1429 = vld [vmem:[#allocation2 + $0x138] sm:$0xff]
          %v1430 = vld [vmem:[#allocation2 + $0x140] sm:$0xff]
          %v1431 = vld [vmem:[#allocation2 + $0x148] sm:$0xff]
          %v1432 = vld [vmem:[#allocation2 + $0x150] sm:$0xff]
          %v1433 = vld [vmem:[#allocation2 + $0x158] sm:$0xff]
          %v1434 = vld [vmem:[#allocation2 + $0x160] sm:$0xff]
          %v1435 = vld [vmem:[#allocation2 + $0x168] sm:$0xff]
          %v1436 = vld [vmem:[#allocation2 + $0x170] sm:$0xff]
          %v1437 = vld [vmem:[#allocation2 + $0x178] sm:$0xff]
          %v1438 = vld [vmem:[#allocation2 + $0x180] sm:$0xff]
          %v1439 = vld [vmem:[#allocation2 + $0x188] sm:$0xff]
          %v1440 = vld [vmem:[#allocation2 + $0x190] sm:$0xff]
          %v1441 = vld [vmem:[#allocation2 + $0x198] sm:$0xff]
          %v1442 = vld [vmem:[#allocation2 + $0x1a0] sm:$0xff]
          %v1443 = vld [vmem:[#allocation2 + $0x1a8] sm:$0xff]
          %v1444 = vld [vmem:[#allocation2 + $0x1b0] sm:$0xff]
          %v1445 = vld [vmem:[#allocation2 + $0x1b8] sm:$0xff]
          %v1446 = vld [vmem:[#allocation2 + $0x1c0] sm:$0xff]
          %v1447 = vld [vmem:[#allocation2 + $0x1c8] sm:$0xff]
          %v1448 = vld [vmem:[#allocation2 + $0x1d0] sm:$0xff]
          %v1449 = vld [vmem:[#allocation2 + $0x1d8] sm:$0xff]
          %v1450 = vld [vmem:[#allocation2 + $0x1e0] sm:$0xff]
          %v1451 = vld [vmem:[#allocation2 + $0x1e8] sm:$0xff]
          %v1452 = vld [vmem:[#allocation2 + $0x1f0] sm:$0xff]
          %v1453 = vld [vmem:[#allocation2 + $0x1f8] sm:$0xff]
          %v1454 = vpack.c.bf16 %v1391, %v1390
          %v1455 = vpack.c.bf16 %v1393, %v1392
          %v1456 = vpack.c.bf16 %v1395, %v1394
          %v1457 = vpack.c.bf16 %v1397, %v1396
          %v1458 = vpack.c.bf16 %v1399, %v1398
          %v1459 = vpack.c.bf16 %v1401, %v1400
          %v1460 = vpack.c.bf16 %v1403, %v1402
          %v1461 = vpack.c.bf16 %v1405, %v1404
          %v1462 = vpack.c.bf16 %v1407, %v1406
          %v1463 = vpack.c.bf16 %v1409, %v1408
          %v1464 = vpack.c.bf16 %v1411, %v1410
          %v1465 = vpack.c.bf16 %v1413, %v1412
          %v1466 = vpack.c.bf16 %v1415, %v1414
          %v1467 = vpack.c.bf16 %v1417, %v1416
          %v1468 = vpack.c.bf16 %v1419, %v1418
          %v1469 = vpack.c.bf16 %v1421, %v1420
          %v1470 = vpack.c.bf16 %v1423, %v1422
          %v1471 = vpack.c.bf16 %v1425, %v1424
          %v1472 = vpack.c.bf16 %v1427, %v1426
          %v1473 = vpack.c.bf16 %v1429, %v1428
          %v1474 = vpack.c.bf16 %v1431, %v1430
          %v1475 = vpack.c.bf16 %v1433, %v1432
          %v1476 = vpack.c.bf16 %v1435, %v1434
          %v1477 = vpack.c.bf16 %v1437, %v1436
          %v1478 = vpack.c.bf16 %v1439, %v1438
          %v1479 = vpack.c.bf16 %v1441, %v1440
          %v1480 = vpack.c.bf16 %v1443, %v1442
          %v1481 = vpack.c.bf16 %v1445, %v1444
          %v1482 = vpack.c.bf16 %v1447, %v1446
          %v1483 = vpack.c.bf16 %v1449, %v1448
          %v1484 = vpack.c.bf16 %v1451, %v1450
          %v1485 = vpack.c.bf16 %v1453, %v1452
          %v1518 = vunpack.c.l.b16 %v1454
          %v1519 = vunpack.c.h.b16 %v1454
          %v1520 = vunpack.c.l.b16 %v1455
          %v1521 = vunpack.c.h.b16 %v1455
          %v1522 = vunpack.c.l.b16 %v1456
          %v1523 = vunpack.c.h.b16 %v1456
          %v1524 = vunpack.c.l.b16 %v1457
          %v1525 = vunpack.c.h.b16 %v1457
          %v1526 = vunpack.c.l.b16 %v1458
          %v1527 = vunpack.c.h.b16 %v1458
          %v1528 = vunpack.c.l.b16 %v1459
          %v1529 = vunpack.c.h.b16 %v1459
          %v1530 = vunpack.c.l.b16 %v1460
          %v1531 = vunpack.c.h.b16 %v1460
          %v1532 = vunpack.c.l.b16 %v1461
          %v1533 = vunpack.c.h.b16 %v1461
          %v1534 = vunpack.c.l.b16 %v1462
          %v1535 = vunpack.c.h.b16 %v1462
          %v1536 = vunpack.c.l.b16 %v1463
          %v1537 = vunpack.c.h.b16 %v1463
          %v1538 = vunpack.c.l.b16 %v1464
          %v1539 = vunpack.c.h.b16 %v1464
          %v1540 = vunpack.c.l.b16 %v1465
          %v1541 = vunpack.c.h.b16 %v1465
          %v1542 = vunpack.c.l.b16 %v1466
          %v1543 = vunpack.c.h.b16 %v1466
          %v1544 = vunpack.c.l.b16 %v1467
          %v1545 = vunpack.c.h.b16 %v1467
          %v1546 = vunpack.c.l.b16 %v1468
          %v1547 = vunpack.c.h.b16 %v1468
          %v1548 = vunpack.c.l.b16 %v1469
          %v1549 = vunpack.c.h.b16 %v1469
          %v1550 = vunpack.c.l.b16 %v1470
          %v1551 = vunpack.c.h.b16 %v1470
          %v1552 = vunpack.c.l.b16 %v1471
          %v1553 = vunpack.c.h.b16 %v1471
          %v1554 = vunpack.c.l.b16 %v1472
          %v1555 = vunpack.c.h.b16 %v1472
          %v1556 = vunpack.c.l.b16 %v1473
          %v1557 = vunpack.c.h.b16 %v1473
          %v1558 = vunpack.c.l.b16 %v1474
          %v1559 = vunpack.c.h.b16 %v1474
          %v1560 = vunpack.c.l.b16 %v1475
          %v1561 = vunpack.c.h.b16 %v1475
          %v1562 = vunpack.c.l.b16 %v1476
          %v1563 = vunpack.c.h.b16 %v1476
          %v1564 = vunpack.c.l.b16 %v1477
          %v1565 = vunpack.c.h.b16 %v1477
          %v1566 = vunpack.c.l.b16 %v1478
          %v1567 = vunpack.c.h.b16 %v1478
          %v1568 = vunpack.c.l.b16 %v1479
          %v1569 = vunpack.c.h.b16 %v1479
          %v1570 = vunpack.c.l.b16 %v1480
          %v1571 = vunpack.c.h.b16 %v1480
          %v1572 = vunpack.c.l.b16 %v1481
          %v1573 = vunpack.c.h.b16 %v1481
          %v1574 = vunpack.c.l.b16 %v1482
          %v1575 = vunpack.c.h.b16 %v1482
          %v1576 = vunpack.c.l.b16 %v1483
          %v1577 = vunpack.c.h.b16 %v1483
          %v1578 = vunpack.c.l.b16 %v1484
          %v1579 = vunpack.c.h.b16 %v1484
          %v1580 = vunpack.c.l.b16 %v1485
          %v1581 = vunpack.c.h.b16 %v1485
          %v1582 = vpack.c.b16 %v1518, %v1518
          %v1583 = vpack.c.b16 %v1519, %v1519
          %v1584 = vpack.c.b16 %v1520, %v1520
          %v1585 = vpack.c.b16 %v1521, %v1521
          %v1586 = vpack.c.b16 %v1522, %v1522
          %v1587 = vpack.c.b16 %v1523, %v1523
          %v1588 = vpack.c.b16 %v1524, %v1524
          %v1589 = vpack.c.b16 %v1525, %v1525
          %v1590 = vpack.c.b16 %v1526, %v1526
          %v1591 = vpack.c.b16 %v1527, %v1527
          %v1592 = vpack.c.b16 %v1528, %v1528
          %v1593 = vpack.c.b16 %v1529, %v1529
          %v1594 = vpack.c.b16 %v1530, %v1530
          %v1595 = vpack.c.b16 %v1531, %v1531
          %v1596 = vpack.c.b16 %v1532, %v1532
          %v1597 = vpack.c.b16 %v1533, %v1533
          %v1598 = vpack.c.b16 %v1534, %v1534
          %v1599 = vpack.c.b16 %v1535, %v1535
          %v1600 = vpack.c.b16 %v1536, %v1536
          %v1601 = vpack.c.b16 %v1537, %v1537
          %v1602 = vpack.c.b16 %v1538, %v1538
          %v1603 = vpack.c.b16 %v1539, %v1539
          %v1604 = vpack.c.b16 %v1540, %v1540
          %v1605 = vpack.c.b16 %v1541, %v1541
          %v1606 = vpack.c.b16 %v1542, %v1542
          %v1607 = vpack.c.b16 %v1543, %v1543
          %v1608 = vpack.c.b16 %v1544, %v1544
          %v1609 = vpack.c.b16 %v1545, %v1545
          %v1610 = vpack.c.b16 %v1546, %v1546
          %v1611 = vpack.c.b16 %v1547, %v1547
          %v1612 = vpack.c.b16 %v1548, %v1548
          %v1613 = vpack.c.b16 %v1549, %v1549
          %v1614 = vpack.c.b16 %v1550, %v1550
          %v1615 = vpack.c.b16 %v1551, %v1551
          %v1616 = vpack.c.b16 %v1552, %v1552
          %v1617 = vpack.c.b16 %v1553, %v1553
          %v1618 = vpack.c.b16 %v1554, %v1554
          %v1619 = vpack.c.b16 %v1555, %v1555
          %v1620 = vpack.c.b16 %v1556, %v1556
          %v1621 = vpack.c.b16 %v1557, %v1557
          %v1622 = vpack.c.b16 %v1558, %v1558
          %v1623 = vpack.c.b16 %v1559, %v1559
          %v1624 = vpack.c.b16 %v1560, %v1560
          %v1625 = vpack.c.b16 %v1561, %v1561
          %v1626 = vpack.c.b16 %v1562, %v1562
          %v1627 = vpack.c.b16 %v1563, %v1563
          %v1628 = vpack.c.b16 %v1564, %v1564
          %v1629 = vpack.c.b16 %v1565, %v1565
          %v1630 = vpack.c.b16 %v1566, %v1566
          %v1631 = vpack.c.b16 %v1567, %v1567
          %v1632 = vpack.c.b16 %v1568, %v1568
          %v1633 = vpack.c.b16 %v1569, %v1569
          %v1634 = vpack.c.b16 %v1570, %v1570
          %v1635 = vpack.c.b16 %v1571, %v1571
          %v1636 = vpack.c.b16 %v1572, %v1572
          %v1637 = vpack.c.b16 %v1573, %v1573
          %v1638 = vpack.c.b16 %v1574, %v1574
          %v1639 = vpack.c.b16 %v1575, %v1575
          %v1640 = vpack.c.b16 %v1576, %v1576
          %v1641 = vpack.c.b16 %v1577, %v1577
          %v1642 = vpack.c.b16 %v1578, %v1578
          %v1643 = vpack.c.b16 %v1579, %v1579
          %v1644 = vpack.c.b16 %v1580, %v1580
          %v1645 = vpack.c.b16 %v1581, %v1581
          %vm1710 = vcmask 519168
          %1711 = vst.msk [vmem:[%s301] sm:$0xf] %vm1710, %v1582
          %1712 = vst.msk [vmem:[%s301 + $0x4] sm:$0xf] %vm1710, %v1583
          %1713 = vst.msk [vmem:[%s301 + $0x8] sm:$0xf] %vm1710, %v1584
          %1714 = vst.msk [vmem:[%s301 + $0xc] sm:$0xf] %vm1710, %v1585
          %1715 = vst.msk [vmem:[%s301 + $0x10] sm:$0xf] %vm1710, %v1586
          %1716 = vst.msk [vmem:[%s301 + $0x14] sm:$0xf] %vm1710, %v1587
          %1717 = vst.msk [vmem:[%s301 + $0x18] sm:$0xf] %vm1710, %v1588
          %1718 = vst.msk [vmem:[%s301 + $0x1c] sm:$0xf] %vm1710, %v1589
          %1719 = vst.msk [vmem:[%s301 + $0x20] sm:$0xf] %vm1710, %v1590
          %1720 = vst.msk [vmem:[%s301 + $0x24] sm:$0xf] %vm1710, %v1591
          %1721 = vst.msk [vmem:[%s301 + $0x28] sm:$0xf] %vm1710, %v1592
          %1722 = vst.msk [vmem:[%s301 + $0x2c] sm:$0xf] %vm1710, %v1593
          %1723 = vst.msk [vmem:[%s301 + $0x30] sm:$0xf] %vm1710, %v1594
          %1724 = vst.msk [vmem:[%s301 + $0x34] sm:$0xf] %vm1710, %v1595
          %1725 = vst.msk [vmem:[%s301 + $0x38] sm:$0xf] %vm1710, %v1596
          %1726 = vst.msk [vmem:[%s301 + $0x3c] sm:$0xf] %vm1710, %v1597
          %1727 = vst.msk [vmem:[%s301 + $0x40] sm:$0xf] %vm1710, %v1598
          %1728 = vst.msk [vmem:[%s301 + $0x44] sm:$0xf] %vm1710, %v1599
          %1729 = vst.msk [vmem:[%s301 + $0x48] sm:$0xf] %vm1710, %v1600
          %1730 = vst.msk [vmem:[%s301 + $0x4c] sm:$0xf] %vm1710, %v1601
          %1731 = vst.msk [vmem:[%s301 + $0x50] sm:$0xf] %vm1710, %v1602
          %1732 = vst.msk [vmem:[%s301 + $0x54] sm:$0xf] %vm1710, %v1603
          %1733 = vst.msk [vmem:[%s301 + $0x58] sm:$0xf] %vm1710, %v1604
          %1734 = vst.msk [vmem:[%s301 + $0x5c] sm:$0xf] %vm1710, %v1605
          %1735 = vst.msk [vmem:[%s301 + $0x60] sm:$0xf] %vm1710, %v1606
          %1736 = vst.msk [vmem:[%s301 + $0x64] sm:$0xf] %vm1710, %v1607
          %1737 = vst.msk [vmem:[%s301 + $0x68] sm:$0xf] %vm1710, %v1608
          %1738 = vst.msk [vmem:[%s301 + $0x6c] sm:$0xf] %vm1710, %v1609
          %1739 = vst.msk [vmem:[%s301 + $0x70] sm:$0xf] %vm1710, %v1610
          %1740 = vst.msk [vmem:[%s301 + $0x74] sm:$0xf] %vm1710, %v1611
          %1741 = vst.msk [vmem:[%s301 + $0x78] sm:$0xf] %vm1710, %v1612
          %1742 = vst.msk [vmem:[%s301 + $0x7c] sm:$0xf] %vm1710, %v1613
          %1743 = vst.msk [vmem:[%s301 + $0x80] sm:$0xf] %vm1710, %v1614
          %1744 = vst.msk [vmem:[%s301 + $0x84] sm:$0xf] %vm1710, %v1615
          %1745 = vst.msk [vmem:[%s301 + $0x88] sm:$0xf] %vm1710, %v1616
          %1746 = vst.msk [vmem:[%s301 + $0x8c] sm:$0xf] %vm1710, %v1617
          %1747 = vst.msk [vmem:[%s301 + $0x90] sm:$0xf] %vm1710, %v1618
          %1748 = vst.msk [vmem:[%s301 + $0x94] sm:$0xf] %vm1710, %v1619
          %1749 = vst.msk [vmem:[%s301 + $0x98] sm:$0xf] %vm1710, %v1620
          %1750 = vst.msk [vmem:[%s301 + $0x9c] sm:$0xf] %vm1710, %v1621
          %1751 = vst.msk [vmem:[%s301 + $0xa0] sm:$0xf] %vm1710, %v1622
          %1752 = vst.msk [vmem:[%s301 + $0xa4] sm:$0xf] %vm1710, %v1623
          %1753 = vst.msk [vmem:[%s301 + $0xa8] sm:$0xf] %vm1710, %v1624
          %1754 = vst.msk [vmem:[%s301 + $0xac] sm:$0xf] %vm1710, %v1625
          %1755 = vst.msk [vmem:[%s301 + $0xb0] sm:$0xf] %vm1710, %v1626
          %1756 = vst.msk [vmem:[%s301 + $0xb4] sm:$0xf] %vm1710, %v1627
          %1757 = vst.msk [vmem:[%s301 + $0xb8] sm:$0xf] %vm1710, %v1628
          %1758 = vst.msk [vmem:[%s301 + $0xbc] sm:$0xf] %vm1710, %v1629
          %1759 = vst.msk [vmem:[%s301 + $0xc0] sm:$0xf] %vm1710, %v1630
          %1760 = vst.msk [vmem:[%s301 + $0xc4] sm:$0xf] %vm1710, %v1631
          %1761 = vst.msk [vmem:[%s301 + $0xc8] sm:$0xf] %vm1710, %v1632
          %1762 = vst.msk [vmem:[%s301 + $0xcc] sm:$0xf] %vm1710, %v1633
          %1763 = vst.msk [vmem:[%s301 + $0xd0] sm:$0xf] %vm1710, %v1634
          %1764 = vst.msk [vmem:[%s301 + $0xd4] sm:$0xf] %vm1710, %v1635
          %1765 = vst.msk [vmem:[%s301 + $0xd8] sm:$0xf] %vm1710, %v1636
          %1766 = vst.msk [vmem:[%s301 + $0xdc] sm:$0xf] %vm1710, %v1637
          %1767 = vst.msk [vmem:[%s301 + $0xe0] sm:$0xf] %vm1710, %v1638
          %1768 = vst.msk [vmem:[%s301 + $0xe4] sm:$0xf] %vm1710, %v1639
          %1769 = vst.msk [vmem:[%s301 + $0xe8] sm:$0xf] %vm1710, %v1640
          %1770 = vst.msk [vmem:[%s301 + $0xec] sm:$0xf] %vm1710, %v1641
          %1771 = vst.msk [vmem:[%s301 + $0xf0] sm:$0xf] %vm1710, %v1642
          %1772 = vst.msk [vmem:[%s301 + $0xf4] sm:$0xf] %vm1710, %v1643
          %1773 = vst.msk [vmem:[%s301 + $0xf8] sm:$0xf] %vm1710, %v1644
          %1774 = vst.msk [vmem:[%s301 + $0xfc] sm:$0xf] %vm1710, %v1645
          %v1775 = vsel %vm1322, %v1390, 0.0
          %v1776 = vsel %vm1322, %v1391, 0.0
          %v1777 = vadd.f32 %v1775, %v1776
          %v1778 = vsel %vm1322, %v1392, 0.0
          %v1779 = vadd.f32 %v1777, %v1778
          %v1780 = vsel %vm1322, %v1393, 0.0
          %v1781 = vadd.f32 %v1779, %v1780
          %v1782 = vsel %vm1322, %v1394, 0.0
          %v1783 = vadd.f32 %v1781, %v1782
          %v1784 = vsel %vm1322, %v1395, 0.0
          %v1785 = vadd.f32 %v1783, %v1784
          %v1786 = vsel %vm1322, %v1396, 0.0
          %v1787 = vadd.f32 %v1785, %v1786
          %v1788 = vsel %vm1322, %v1397, 0.0
          %v1789 = vadd.f32 %v1787, %v1788
          %v1790 = vsel %vm1322, %v1398, 0.0
          %v1791 = vadd.f32 %v1789, %v1790
          %v1792 = vsel %vm1322, %v1399, 0.0
          %v1793 = vadd.f32 %v1791, %v1792
          %v1794 = vsel %vm1322, %v1400, 0.0
          %v1795 = vadd.f32 %v1793, %v1794
          %v1796 = vsel %vm1322, %v1401, 0.0
          %v1797 = vadd.f32 %v1795, %v1796
          %v1798 = vsel %vm1322, %v1402, 0.0
          %v1799 = vadd.f32 %v1797, %v1798
          %v1800 = vsel %vm1322, %v1403, 0.0
          %v1801 = vadd.f32 %v1799, %v1800
          %v1802 = vsel %vm1322, %v1404, 0.0
          %v1803 = vadd.f32 %v1801, %v1802
          %v1804 = vsel %vm1322, %v1405, 0.0
          %v1805 = vadd.f32 %v1803, %v1804
          %v1806 = vsel %vm1322, %v1406, 0.0
          %v1807 = vadd.f32 %v1805, %v1806
          %v1808 = vsel %vm1322, %v1407, 0.0
          %v1809 = vadd.f32 %v1807, %v1808
          %v1810 = vsel %vm1322, %v1408, 0.0
          %v1811 = vadd.f32 %v1809, %v1810
          %v1812 = vsel %vm1322, %v1409, 0.0
          %v1813 = vadd.f32 %v1811, %v1812
          %v1814 = vsel %vm1322, %v1410, 0.0
          %v1815 = vadd.f32 %v1813, %v1814
          %v1816 = vsel %vm1322, %v1411, 0.0
          %v1817 = vadd.f32 %v1815, %v1816
          %v1818 = vsel %vm1322, %v1412, 0.0
          %v1819 = vadd.f32 %v1817, %v1818
          %v1820 = vsel %vm1322, %v1413, 0.0
          %v1821 = vadd.f32 %v1819, %v1820
          %v1822 = vsel %vm1322, %v1414, 0.0
          %v1823 = vadd.f32 %v1821, %v1822
          %v1824 = vsel %vm1322, %v1415, 0.0
          %v1825 = vadd.f32 %v1823, %v1824
          %v1826 = vsel %vm1322, %v1416, 0.0
          %v1827 = vadd.f32 %v1825, %v1826
          %v1828 = vsel %vm1322, %v1417, 0.0
          %v1829 = vadd.f32 %v1827, %v1828
          %v1830 = vsel %vm1322, %v1418, 0.0
          %v1831 = vadd.f32 %v1829, %v1830
          %v1832 = vsel %vm1322, %v1419, 0.0
          %v1833 = vadd.f32 %v1831, %v1832
          %v1834 = vsel %vm1322, %v1420, 0.0
          %v1835 = vadd.f32 %v1833, %v1834
          %v1836 = vsel %vm1322, %v1421, 0.0
          %v1837 = vadd.f32 %v1835, %v1836
          %v1838 = vsel %vm1322, %v1422, 0.0
          %v1839 = vadd.f32 %v1837, %v1838
          %v1840 = vsel %vm1322, %v1423, 0.0
          %v1841 = vadd.f32 %v1839, %v1840
          %v1842 = vsel %vm1322, %v1424, 0.0
          %v1843 = vadd.f32 %v1841, %v1842
          %v1844 = vsel %vm1322, %v1425, 0.0
          %v1845 = vadd.f32 %v1843, %v1844
          %v1846 = vsel %vm1322, %v1426, 0.0
          %v1847 = vadd.f32 %v1845, %v1846
          %v1848 = vsel %vm1322, %v1427, 0.0
          %v1849 = vadd.f32 %v1847, %v1848
          %v1850 = vsel %vm1322, %v1428, 0.0
          %v1851 = vadd.f32 %v1849, %v1850
          %v1852 = vsel %vm1322, %v1429, 0.0
          %v1853 = vadd.f32 %v1851, %v1852
          %v1854 = vsel %vm1322, %v1430, 0.0
          %v1855 = vadd.f32 %v1853, %v1854
          %v1856 = vsel %vm1322, %v1431, 0.0
          %v1857 = vadd.f32 %v1855, %v1856
          %v1858 = vsel %vm1322, %v1432, 0.0
          %v1859 = vadd.f32 %v1857, %v1858
          %v1860 = vsel %vm1322, %v1433, 0.0
          %v1861 = vadd.f32 %v1859, %v1860
          %v1862 = vsel %vm1322, %v1434, 0.0
          %v1863 = vadd.f32 %v1861, %v1862
          %v1864 = vsel %vm1322, %v1435, 0.0
          %v1865 = vadd.f32 %v1863, %v1864
          %v1866 = vsel %vm1322, %v1436, 0.0
          %v1867 = vadd.f32 %v1865, %v1866
          %v1868 = vsel %vm1322, %v1437, 0.0
          %v1869 = vadd.f32 %v1867, %v1868
          %v1870 = vsel %vm1322, %v1438, 0.0
          %v1871 = vadd.f32 %v1869, %v1870
          %v1872 = vsel %vm1322, %v1439, 0.0
          %v1873 = vadd.f32 %v1871, %v1872
          %v1874 = vsel %vm1322, %v1440, 0.0
          %v1875 = vadd.f32 %v1873, %v1874
          %v1876 = vsel %vm1322, %v1441, 0.0
          %v1877 = vadd.f32 %v1875, %v1876
          %v1878 = vsel %vm1322, %v1442, 0.0
          %v1879 = vadd.f32 %v1877, %v1878
          %v1880 = vsel %vm1322, %v1443, 0.0
          %v1881 = vadd.f32 %v1879, %v1880
          %v1882 = vsel %vm1322, %v1444, 0.0
          %v1883 = vadd.f32 %v1881, %v1882
          %v1884 = vsel %vm1322, %v1445, 0.0
          %v1885 = vadd.f32 %v1883, %v1884
          %v1886 = vsel %vm1322, %v1446, 0.0
          %v1887 = vadd.f32 %v1885, %v1886
          %v1888 = vsel %vm1322, %v1447, 0.0
          %v1889 = vadd.f32 %v1887, %v1888
          %v1890 = vsel %vm1322, %v1448, 0.0
          %v1891 = vadd.f32 %v1889, %v1890
          %v1892 = vsel %vm1322, %v1449, 0.0
          %v1893 = vadd.f32 %v1891, %v1892
          %v1894 = vsel %vm1322, %v1450, 0.0
          %v1895 = vadd.f32 %v1893, %v1894
          %v1896 = vsel %vm1322, %v1451, 0.0
          %v1897 = vadd.f32 %v1895, %v1896
          %v1898 = vsel %vm1322, %v1452, 0.0
          %v1899 = vadd.f32 %v1897, %v1898
          %v1900 = vsel %vm1322, %v1453, 0.0
          %v1901 = vadd.f32 %v1899, %v1900
          %v1902 = vrot.slane %v1901, 4
          %v1903 = vadd.f32 %v1901, %v1902
          %v1904 = vrot.slane %v1903, 2
          %v1905 = vadd.f32 %v1903, %v1904
          %v1906 = vrot.slane %v1905, 1
          %v1907 = vadd.f32 %v1905, %v1906
          %vm1908 = vcmask 516096
          %1909 = vst.msk [vmem:[%s266] sm:$0x1] %vm1908, %v1907
          %v1910 = vmul.f32 %v1390, %v1390
          %v1911 = vmul.f32 %v1391, %v1391
          %v1912 = vmul.f32 %v1392, %v1392
          %v1913 = vmul.f32 %v1393, %v1393
          %v1914 = vmul.f32 %v1394, %v1394
          %v1915 = vmul.f32 %v1395, %v1395
          %v1916 = vmul.f32 %v1396, %v1396
          %v1917 = vmul.f32 %v1397, %v1397
          %v1918 = vmul.f32 %v1398, %v1398
          %v1919 = vmul.f32 %v1399, %v1399
          %v1920 = vmul.f32 %v1400, %v1400
          %v1921 = vmul.f32 %v1401, %v1401
          %v1922 = vmul.f32 %v1402, %v1402
          %v1923 = vmul.f32 %v1403, %v1403
          %v1924 = vmul.f32 %v1404, %v1404
          %v1925 = vmul.f32 %v1405, %v1405
          %v1926 = vmul.f32 %v1406, %v1406
          %v1927 = vmul.f32 %v1407, %v1407
          %v1928 = vmul.f32 %v1408, %v1408
          %v1929 = vmul.f32 %v1409, %v1409
          %v1930 = vmul.f32 %v1410, %v1410
          %v1931 = vmul.f32 %v1411, %v1411
          %v1932 = vmul.f32 %v1412, %v1412
          %v1933 = vmul.f32 %v1413, %v1413
          %v1934 = vmul.f32 %v1414, %v1414
          %v1935 = vmul.f32 %v1415, %v1415
          %v1936 = vmul.f32 %v1416, %v1416
          %v1937 = vmul.f32 %v1417, %v1417
          %v1938 = vmul.f32 %v1418, %v1418
          %v1939 = vmul.f32 %v1419, %v1419
          %v1940 = vmul.f32 %v1420, %v1420
          %v1941 = vmul.f32 %v1421, %v1421
          %v1942 = vmul.f32 %v1422, %v1422
          %v1943 = vmul.f32 %v1423, %v1423
          %v1944 = vmul.f32 %v1424, %v1424
          %v1945 = vmul.f32 %v1425, %v1425
          %v1946 = vmul.f32 %v1426, %v1426
          %v1947 = vmul.f32 %v1427, %v1427
          %v1948 = vmul.f32 %v1428, %v1428
          %v1949 = vmul.f32 %v1429, %v1429
          %v1950 = vmul.f32 %v1430, %v1430
          %v1951 = vmul.f32 %v1431, %v1431
          %v1952 = vmul.f32 %v1432, %v1432
          %v1953 = vmul.f32 %v1433, %v1433
          %v1954 = vmul.f32 %v1434, %v1434
          %v1955 = vmul.f32 %v1435, %v1435
          %v1956 = vmul.f32 %v1436, %v1436
          %v1957 = vmul.f32 %v1437, %v1437
          %v1958 = vmul.f32 %v1438, %v1438
          %v1959 = vmul.f32 %v1439, %v1439
          %v1960 = vmul.f32 %v1440, %v1440
          %v1961 = vmul.f32 %v1441, %v1441
          %v1962 = vmul.f32 %v1442, %v1442
          %v1963 = vmul.f32 %v1443, %v1443
          %v1964 = vmul.f32 %v1444, %v1444
          %v1965 = vmul.f32 %v1445, %v1445
          %v1966 = vmul.f32 %v1446, %v1446
          %v1967 = vmul.f32 %v1447, %v1447
          %v1968 = vmul.f32 %v1448, %v1448
          %v1969 = vmul.f32 %v1449, %v1449
          %v1970 = vmul.f32 %v1450, %v1450
          %v1971 = vmul.f32 %v1451, %v1451
          %v1972 = vmul.f32 %v1452, %v1452
          %v1973 = vmul.f32 %v1453, %v1453
          %v1974 = vsel %vm1322, %v1910, 0.0
          %v1975 = vsel %vm1322, %v1911, 0.0
          %v1976 = vadd.f32 %v1974, %v1975
          %v1977 = vsel %vm1322, %v1912, 0.0
          %v1978 = vadd.f32 %v1976, %v1977
          %v1979 = vsel %vm1322, %v1913, 0.0
          %v1980 = vadd.f32 %v1978, %v1979
          %v1981 = vsel %vm1322, %v1914, 0.0
          %v1982 = vadd.f32 %v1980, %v1981
          %v1983 = vsel %vm1322, %v1915, 0.0
          %v1984 = vadd.f32 %v1982, %v1983
          %v1985 = vsel %vm1322, %v1916, 0.0
          %v1986 = vadd.f32 %v1984, %v1985
          %v1987 = vsel %vm1322, %v1917, 0.0
          %v1988 = vadd.f32 %v1986, %v1987
          %v1989 = vsel %vm1322, %v1918, 0.0
          %v1990 = vadd.f32 %v1988, %v1989
          %v1991 = vsel %vm1322, %v1919, 0.0
          %v1992 = vadd.f32 %v1990, %v1991
          %v1993 = vsel %vm1322, %v1920, 0.0
          %v1994 = vadd.f32 %v1992, %v1993
          %v1995 = vsel %vm1322, %v1921, 0.0
          %v1996 = vadd.f32 %v1994, %v1995
          %v1997 = vsel %vm1322, %v1922, 0.0
          %v1998 = vadd.f32 %v1996, %v1997
          %v1999 = vsel %vm1322, %v1923, 0.0
          %v2000 = vadd.f32 %v1998, %v1999
          %v2001 = vsel %vm1322, %v1924, 0.0
          %v2002 = vadd.f32 %v2000, %v2001
          %v2003 = vsel %vm1322, %v1925, 0.0
          %v2004 = vadd.f32 %v2002, %v2003
          %v2005 = vsel %vm1322, %v1926, 0.0
          %v2006 = vadd.f32 %v2004, %v2005
          %v2007 = vsel %vm1322, %v1927, 0.0
          %v2008 = vadd.f32 %v2006, %v2007
          %v2009 = vsel %vm1322, %v1928, 0.0
          %v2010 = vadd.f32 %v2008, %v2009
          %v2011 = vsel %vm1322, %v1929, 0.0
          %v2012 = vadd.f32 %v2010, %v2011
          %v2013 = vsel %vm1322, %v1930, 0.0
          %v2014 = vadd.f32 %v2012, %v2013
          %v2015 = vsel %vm1322, %v1931, 0.0
          %v2016 = vadd.f32 %v2014, %v2015
          %v2017 = vsel %vm1322, %v1932, 0.0
          %v2018 = vadd.f32 %v2016, %v2017
          %v2019 = vsel %vm1322, %v1933, 0.0
          %v2020 = vadd.f32 %v2018, %v2019
          %v2021 = vsel %vm1322, %v1934, 0.0
          %v2022 = vadd.f32 %v2020, %v2021
          %v2023 = vsel %vm1322, %v1935, 0.0
          %v2024 = vadd.f32 %v2022, %v2023
          %v2025 = vsel %vm1322, %v1936, 0.0
          %v2026 = vadd.f32 %v2024, %v2025
          %v2027 = vsel %vm1322, %v1937, 0.0
          %v2028 = vadd.f32 %v2026, %v2027
          %v2029 = vsel %vm1322, %v1938, 0.0
          %v2030 = vadd.f32 %v2028, %v2029
          %v2031 = vsel %vm1322, %v1939, 0.0
          %v2032 = vadd.f32 %v2030, %v2031
          %v2033 = vsel %vm1322, %v1940, 0.0
          %v2034 = vadd.f32 %v2032, %v2033
          %v2035 = vsel %vm1322, %v1941, 0.0
          %v2036 = vadd.f32 %v2034, %v2035
          %v2037 = vsel %vm1322, %v1942, 0.0
          %v2038 = vadd.f32 %v2036, %v2037
          %v2039 = vsel %vm1322, %v1943, 0.0
          %v2040 = vadd.f32 %v2038, %v2039
          %v2041 = vsel %vm1322, %v1944, 0.0
          %v2042 = vadd.f32 %v2040, %v2041
          %v2043 = vsel %vm1322, %v1945, 0.0
          %v2044 = vadd.f32 %v2042, %v2043
          %v2045 = vsel %vm1322, %v1946, 0.0
          %v2046 = vadd.f32 %v2044, %v2045
          %v2047 = vsel %vm1322, %v1947, 0.0
          %v2048 = vadd.f32 %v2046, %v2047
          %v2049 = vsel %vm1322, %v1948, 0.0
          %v2050 = vadd.f32 %v2048, %v2049
          %v2051 = vsel %vm1322, %v1949, 0.0
          %v2052 = vadd.f32 %v2050, %v2051
          %v2053 = vsel %vm1322, %v1950, 0.0
          %v2054 = vadd.f32 %v2052, %v2053
          %v2055 = vsel %vm1322, %v1951, 0.0
          %v2056 = vadd.f32 %v2054, %v2055
          %v2057 = vsel %vm1322, %v1952, 0.0
          %v2058 = vadd.f32 %v2056, %v2057
          %v2059 = vsel %vm1322, %v1953, 0.0
          %v2060 = vadd.f32 %v2058, %v2059
          %v2061 = vsel %vm1322, %v1954, 0.0
          %v2062 = vadd.f32 %v2060, %v2061
          %v2063 = vsel %vm1322, %v1955, 0.0
          %v2064 = vadd.f32 %v2062, %v2063
          %v2065 = vsel %vm1322, %v1956, 0.0
          %v2066 = vadd.f32 %v2064, %v2065
          %v2067 = vsel %vm1322, %v1957, 0.0
          %v2068 = vadd.f32 %v2066, %v2067
          %v2069 = vsel %vm1322, %v1958, 0.0
          %v2070 = vadd.f32 %v2068, %v2069
          %v2071 = vsel %vm1322, %v1959, 0.0
          %v2072 = vadd.f32 %v2070, %v2071
          %v2073 = vsel %vm1322, %v1960, 0.0
          %v2074 = vadd.f32 %v2072, %v2073
          %v2075 = vsel %vm1322, %v1961, 0.0
          %v2076 = vadd.f32 %v2074, %v2075
          %v2077 = vsel %vm1322, %v1962, 0.0
          %v2078 = vadd.f32 %v2076, %v2077
          %v2079 = vsel %vm1322, %v1963, 0.0
          %v2080 = vadd.f32 %v2078, %v2079
          %v2081 = vsel %vm1322, %v1964, 0.0
          %v2082 = vadd.f32 %v2080, %v2081
          %v2083 = vsel %vm1322, %v1965, 0.0
          %v2084 = vadd.f32 %v2082, %v2083
          %v2085 = vsel %vm1322, %v1966, 0.0
          %v2086 = vadd.f32 %v2084, %v2085
          %v2087 = vsel %vm1322, %v1967, 0.0
          %v2088 = vadd.f32 %v2086, %v2087
          %v2089 = vsel %vm1322, %v1968, 0.0
          %v2090 = vadd.f32 %v2088, %v2089
          %v2091 = vsel %vm1322, %v1969, 0.0
          %v2092 = vadd.f32 %v2090, %v2091
          %v2093 = vsel %vm1322, %v1970, 0.0
          %v2094 = vadd.f32 %v2092, %v2093
          %v2095 = vsel %vm1322, %v1971, 0.0
          %v2096 = vadd.f32 %v2094, %v2095
          %v2097 = vsel %vm1322, %v1972, 0.0
          %v2098 = vadd.f32 %v2096, %v2097
          %v2099 = vsel %vm1322, %v1973, 0.0
          %v2100 = vadd.f32 %v2098, %v2099
          %v2101 = vrot.slane %v2100, 4
          %v2102 = vadd.f32 %v2100, %v2101
          %v2103 = vrot.slane %v2102, 2
          %v2104 = vadd.f32 %v2102, %v2103
          %v2105 = vrot.slane %v2104, 1
          %v2106 = vadd.f32 %v2104, %v2105
          %2107 = vst.msk [vmem:[%s272] sm:$0x1] %vm1908, %v2106
        $region36: #{tpu_custom_call.1} parent=27 // pred_fallthru
          _
        %s2108 = smul.u32 64, %s27
        %p2109 = scmp.lt.s32.totalorder %s2108, 255
        %s2110 = scalar_select %p2109, %s2108, 255
        %p2111 = scmp.lt.s32.totalorder %s28, 0
        %s2112 = scalar_select %p2111, %s28, 0
        %s2113 = sadd.s32 %s2112, %s2110
        %s2114 = smul.addr %s2113, 4
        %s2115 = scalar_lea.vmem %s2, %s2114
        %s2116 = sand.u32 %s135, 1
        %s2117 = scalar_lea.sflag [#allocation4], %s2116
        %s2118 = sand.u32 %s135, 1
        %s2119 = scalar_lea.vmem [#allocation3], %s2118
        %s2120 = sand.u32 %s163, 1
        %s2121 = scalar_lea.sflag [#allocation6], %s2120
        %s2122 = sand.u32 %s163, 1
        %s2123 = scalar_lea.vmem [#allocation5], %s2122
        // Predicated region
        $region37: #{tpu_custom_call.1} parent=27 // pred_check
          %p2124 = pneg %p117
        $region38: #{tpu_custom_call.1} parent=27 // pred_check_branch
          %2126 = sbr.rel (%p2124) target = $region40
        $region39: #{tpu_custom_call.1} parent=27 // pred_region
          %s2127 = smul.u32 64, %s27
        $region40: #{tpu_custom_call.1} parent=27 // pred_fallthru
          _
        // Predicated region
        $region41: #{tpu_custom_call.1} parent=27 // pred_check
          %p2128 = pneg %p145
        $region42: #{tpu_custom_call.1} parent=27 // pred_check_branch
          %2130 = sbr.rel (%p2128) target = $region44
        $region43: #{tpu_custom_call.1} parent=27 // pred_region
          %s2132 = ssub.s32 16, 16
          %2133 = vsyncadd %s2117, %s2132
          %s2134 = sadd.s32 %s28, %s27
          %s2135 = smul.addr %s2134, 16
          %s2136 = scalar_lea.hbm %s3, %s2135
          %s2138 = sshll.u32 %s2119, 4
          %s2139 = int_to_ptr.vmem [resolvable:$true] %s2138
          %2141 = dma.vmem_to_hbm [thread:$0]  %s2139, 16, %s2136, %s2117
        $region44: #{tpu_custom_call.1} parent=27 // pred_fallthru
          _
        // Predicated region
        $region45: #{tpu_custom_call.1} parent=27 // pred_check
          %p2142 = pneg %p173
        $region46: #{tpu_custom_call.1} parent=27 // pred_check_branch
          %2144 = sbr.rel (%p2142) target = $region48
        $region47: #{tpu_custom_call.1} parent=27 // pred_region
          %s2146 = ssub.s32 16, 16
          %2147 = vsyncadd %s2121, %s2146
          %s2148 = sadd.s32 %s28, %s27
          %s2149 = smul.addr %s2148, 16
          %s2150 = scalar_lea.hbm %s4, %s2149
          %s2152 = sshll.u32 %s2123, 4
          %s2153 = int_to_ptr.vmem [resolvable:$true] %s2152
          %2155 = dma.vmem_to_hbm [thread:$0]  %s2153, 16, %s2150, %s2121
        $region48: #{tpu_custom_call.1} parent=27 // pred_fallthru
          _
      $region28: #{tpu_custom_call.1} parent=5 // pred_fallthru
        _
      %p2156 = scmp.le.s32.totalorder 2, %s17
      // Predicated region
      $region49: #{tpu_custom_call.1} parent=5 // pred_check
        %p2157 = pneg %p2156
      $region50: #{tpu_custom_call.1} parent=5 // pred_check_branch
        %2159 = sbr.rel (%p2157) target = $region52
      $region51: #{tpu_custom_call.1} parent=5 // pred_region
        %s2160 = ssub.s32 %s17, 2
        // Predicated region
        $region53: #{tpu_custom_call.1} parent=51 // pred_check
          %p2161 = pneg %p123
        $region54: #{tpu_custom_call.1} parent=51 // pred_check_branch
          %2163 = sbr.rel (%p2161) target = $region56
        $region55: #{tpu_custom_call.1} parent=51 // pred_region
          %s2164 = smul.u32 64, %s30
          %p2165 = scmp.lt.s32.totalorder %s2164, 255
          %s2166 = scalar_select %p2165, %s2164, 255
          %p2167 = scmp.lt.s32.totalorder %s31, 0
          %s2168 = scalar_select %p2167, %s31, 0
          %s2169 = sadd.s32 %s2168, %s2166
          %s2170 = smul.addr %s2169, 4
          %s2171 = scalar_lea.vmem %s2, %s2170
        $region56: #{tpu_custom_call.1} parent=51 // pred_fallthru
          _
        // Predicated region
        $region57: #{tpu_custom_call.1} parent=51 // pred_check
          %p2172 = pneg %p151
        $region58: #{tpu_custom_call.1} parent=51 // pred_check_branch
          %2174 = sbr.rel (%p2172) target = $region60
        $region59: #{tpu_custom_call.1} parent=51 // pred_region
          %s2175 = sand.u32 %s136, 1
          %s2176 = scalar_lea.sflag [#allocation4], %s2175
          %s2177 = sand.u32 %s136, 1
          %s2178 = scalar_lea.vmem [#allocation3], %s2177
          %2179 = dma.done %s2176, 16
        $region60: #{tpu_custom_call.1} parent=51 // pred_fallthru
          _
        // Predicated region
        $region61: #{tpu_custom_call.1} parent=51 // pred_check
          %p2180 = pneg %p179
        $region62: #{tpu_custom_call.1} parent=51 // pred_check_branch
          %2182 = sbr.rel (%p2180) target = $region64
        $region63: #{tpu_custom_call.1} parent=51 // pred_region
          %s2183 = sand.u32 %s164, 1
          %s2184 = scalar_lea.sflag [#allocation6], %s2183
          %s2185 = sand.u32 %s164, 1
          %s2186 = scalar_lea.vmem [#allocation5], %s2185
          %2187 = dma.done %s2184, 16
        $region64: #{tpu_custom_call.1} parent=51 // pred_fallthru
          _
      $region52: #{tpu_custom_call.1} parent=5 // pred_fallthru
        _
    $region6: #{tpu_custom_call.1} parent=1 // loop_footer
      %s21 = sadd.s32 1, %s17
    $region7: #{tpu_custom_call.1} parent=1 // loop_footer_branch
      %16 = sbr.rel target = $region3
    $region8: #{tpu_custom_call.1} parent=1 // loop_exit
      _
    %2188 = vsyncpa [#allocation4], 1
    %s2189 = scalar_lea.sflag [#allocation4], 1
    %2190 = vsyncpa %s2189, 1
    %2191 = vsyncpa [#allocation6], 1
    %s2192 = scalar_lea.sflag [#allocation6], 1
    %2193 = vsyncpa %s2192, 1

</llo_original>
